<compile_context>
chip_gen: v6e
topology: v6e:2x2x1
jax: 0.10.0
libtpu: 0.0.40
codegen_flags: <defaults>
</compile_context>

<pallas_src>
from functools import partial

import jax
import jax.numpy as jnp
from jax.experimental import pallas as pl
from jax.experimental.pallas import tpu as pltpu


# ----------------------------------------------------------------------------- Pallas kernel

def _mha_kernel(q_ref, k_ref, v_ref,
                wq_ref, bq_ref, wk_ref, bk_ref, wv_ref, bv_ref, wo_ref, bo_ref,
                *rest, num_heads, scale, store_weights):
    if store_weights:
        out_ref, attnw_ref, kp_ref, vp_ref = rest
    else:
        out_ref, kp_ref, vp_ref = rest
        attnw_ref = None

    cdt = jnp.bfloat16                              # MXU input dtype; accumulation is f32
    bb, tq, e = q_ref.shape
    _, lk, _ = k_ref.shape
    hd = e // num_heads
    j = pl.program_id(1)

    # K / V projections: computed once per batch tile (q-tile axis is sequential) and
    # cached in bf16 VMEM scratch -> re-used by every q tile of this batch tile.
    @pl.when(j == 0)
    def _():
        kf = k_ref[...].reshape(bb * lk, e)
        vf = v_ref[...].reshape(bb * lk, e)
        k = jnp.dot(kf, wk_ref[...], preferred_element_type=jnp.float32) + bk_ref[...]
        v = jnp.dot(vf, wv_ref[...], preferred_element_type=jnp.float32) + bv_ref[...]
        kp_ref[...] = k.reshape(bb, lk, e).astype(cdt)
        vp_ref[...] = v.reshape(bb, lk, e).astype(cdt)

    # Q projection for this (batch, q) tile; fold the softmax scale into q (cheaper than
    # scaling the (bb, tq, lk) score tensor), then drop to bf16 immediately.
    qf = q_ref[...].reshape(bb * tq, e)
    q = jnp.dot(qf, wq_ref[...], preferred_element_type=jnp.float32) + bq_ref[...]
    q3 = (q * scale).astype(cdt).reshape(bb, tq, e)
    k3 = kp_ref[...]                                # (bb, lk, e) bf16
    v3 = vp_ref[...]

    # Per-head attention.  Static unroll (H is small for this projector); contexts are
    # gathered so the out-projection is ONE K=E GEMM after the loop.
    ctx_heads = []
    for h in range(num_heads):
        lo = h * hd
        qh = q3[:, :, lo:lo + hd]                   # (bb, tq, hd) bf16
        kh = k3[:, :, lo:lo + hd]                   # (bb, lk, hd) bf16
        vh = v3[:, :, lo:lo + hd]

        s = jnp.einsum("bqd,bkd->bqk", qh, kh,
                       preferred_element_type=jnp.float32)            # (bb, tq, lk) f32
        s = s - jnp.max(s, axis=-1, keepdims=True)
        p = jnp.exp(s)
        # exact reciprocal: returned attention weights sum to 1 (matches PyTorch softmax)
        p = p * pl.reciprocal(jnp.sum(p, axis=-1, keepdims=True), approx=False)

        if store_weights:
            attnw_ref[:, h] = p                     # final (B, H, Lq, Lk) layout directly

        ctx_heads.append(
            jnp.einsum("bqk,bkd->bqd", p.astype(cdt), vh,
                       preferred_element_type=jnp.float32).astype(cdt))

    # out-proj: one bf16 GEMM with full contraction depth K=E, f32 accumulate + f32 bias.
    ctx = jnp.concatenate(ctx_heads, axis=-1).reshape(bb * tq, e)     # (bb*tq, E) bf16
    out = jnp.dot(ctx, wo_ref[...], preferred_element_type=jnp.float32) + bo_ref[...]
    out_ref[...] = out.reshape(bb, tq, e).astype(out_ref.dtype)


# ----------------------------------------------------------------------------- host wrapper

def mha_forward(query, key, value,
                wq, bq, wk, bk, wv, bv, wo, bo,
                *, num_heads, scale, block_b=8, block_q=128, need_weights=True):
    """query: (B, Lq, E); key/value: (B, Lk, E); weights (E, E) bf16 (in, out); biases (1, E) f32."""
    B, Lq, E = query.shape
    _, Lk, _ = key.shape
    H = num_heads

    bb = max(1, min(block_b, B))
    tq = Lq if Lq <= block_q else block_q           # full Lq or a multiple-of-8 tile
    grid = (pl.cdiv(B, bb), pl.cdiv(Lq, tq))        # no batch padding pass: edge blocks masked

    qb = query.astype(jnp.bfloat16)                 # bf16 activations: half the DMA bytes
    kb = key.astype(jnp.bfloat16)
    vb = value.astype(jnp.bfloat16)

    kernel = partial(_mha_kernel, num_heads=H, scale=scale, store_weights=need_weights)

    wspec = pl.BlockSpec((E, E), lambda i, j: (0, 0))   # constant index -> fetched once
    bspec = pl.BlockSpec((1, E), lambda i, j: (0, 0))
    in_specs = [
        pl.BlockSpec((bb, tq, E), lambda i, j: (i, j, 0)),    # q: blocked over batch + Lq
        pl.BlockSpec((bb, Lk, E), lambda i, j: (i, 0, 0)),    # k: blocked over batch only
        pl.BlockSpec((bb, Lk, E), lambda i, j: (i, 0, 0)),    # v
        wspec, bspec, wspec, bspec, wspec, bspec, wspec, bspec,
    ]

    if need_weights:
        out_shape = (jax.ShapeDtypeStruct((B, Lq, E), query.dtype),
                     jax.ShapeDtypeStruct((B, H, Lq, Lk), jnp.float32))
        out_specs = (pl.BlockSpec((bb, tq, E), lambda i, j: (i, j, 0)),
                     pl.BlockSpec((bb, H, tq, Lk), lambda i, j: (i, 0, j, 0)))
    else:
        out_shape = jax.ShapeDtypeStruct((B, Lq, E), query.dtype)
        out_specs = pl.BlockSpec((bb, tq, E), lambda i, j: (i, j, 0))

    result = pl.pallas_call(
        kernel,
        out_shape=out_shape,
        grid=grid,
        in_specs=in_specs,
        out_specs=out_specs,
        scratch_shapes=[
            pltpu.VMEM((bb, Lk, E), jnp.bfloat16),  # projected K, cached across q tiles
            pltpu.VMEM((bb, Lk, E), jnp.bfloat16),  # projected V
        ],
        compiler_params=pltpu.CompilerParams(
            # q-tile axis is "arbitrary" so the K/V projection cache is valid across it
            dimension_semantics=("parallel", "arbitrary"),
            vmem_limit_bytes=64 * 1024 * 1024,
        ),
    )(qb, kb, vb, wq, bq, wk, bk, wv, bv, wo, bo)

    if need_weights:
        out, attnw = result
        return out, attnw
    return result, None


# ----------------------------------------------------------------------------- module wrapper

class MultiheadAttentionPallas:
    """MultiheadAttention forward (dropout=0.0, attention_mask=None, logit_scale=None path)."""

    def __init__(self, key, *, embed_dim, num_heads, dropout=0.0, param_std=0.1):
        if embed_dim % num_heads != 0:
            raise ValueError("embed_dim must be divisible by num_heads")
        self.embed_dim = embed_dim
        self.num_heads = num_heads
        self.head_dim = embed_dim // num_heads
        self.scale = self.head_dim ** (-0.5)
        self.dropout = dropout                      # 0.0 -> dropout is identity

        ks = jax.random.split(key, 8)

        def w(k):   # Linear weight stored pre-transposed (in, out); bf16 for MXU + DMA
            return (jax.random.normal(k, (embed_dim, embed_dim), jnp.float32)
                    * param_std).astype(jnp.bfloat16)

        def b(k):   # PyTorch init zeroes biases; random here so the bias path is exercised
            return jax.random.normal(k, (1, embed_dim), jnp.float32) * param_std

        self.wq, self.bq = w(ks[0]), b(ks[1])
        self.wk, self.bk = w(ks[2]), b(ks[3])
        self.wv, self.bv = w(ks[4]), b(ks[5])
        self.wo, self.bo = w(ks[6]), b(ks[7])

    def __call__(self, query, key, value, attention_mask=None,
                 block_b=8, block_q=128, need_weights=True):
        # TODO(synk): attention_mask / logit_scale / logit_bias branches not implemented.
        assert attention_mask is None
        return mha_forward(query, key, value,
                           self.wq, self.bq, self.wk, self.bk,
                           self.wv, self.bv, self.wo, self.bo,
                           num_heads=self.num_heads, scale=self.scale,
                           block_b=block_b, block_q=block_q, need_weights=need_weights)

    # pure-JAX f32 reference (same math as the PyTorch module)
    def reference(self, query, key, value):
        B, Lq, E = query.shape
        _, Lk, _ = key.shape
        H, hd = self.num_heads, self.head_dim
        wq, wk = self.wq.astype(jnp.float32), self.wk.astype(jnp.float32)
        wv, wo = self.wv.astype(jnp.float32), self.wo.astype(jnp.float32)
        q = query @ wq + self.bq
        k = key @ wk + self.bk
        v = value @ wv + self.bv
        q = q.reshape(B, Lq, H, hd).transpose(0, 2, 1, 3)
        k = k.reshape(B, Lk, H, hd).transpose(0, 2, 1, 3)
        v = v.reshape(B, Lk, H, hd).transpose(0, 2, 1, 3)
        s = jnp.einsum("bhqd,bhkd->bhqk", q, k) * self.scale
        p = jax.nn.softmax(s.astype(jnp.float32), axis=-1)
        ctx = jnp.einsum("bhqk,bhkd->bhqd", p, v)
        ctx = ctx.transpose(0, 2, 1, 3).reshape(B, Lq, E)
        out = ctx @ wo + self.bo
        return out, p


# ----------------------------------------------------------------------------- main

if __name__ == "__main__":
    root = jax.random.PRNGKey(0)
    k_inp, k_par = jax.random.split(root)
    kq, kk, kv = jax.random.split(k_inp, 3)

    # small synthetic shapes: batch=5 (not divisible by the batch tile -> exercises the
    # masked partial edge block), q_len=8, kv_len=16, embed_dim=32, num_heads=4
    B, LQ, LK, E, H = 5, 8, 16, 32, 4
    query = jax.random.normal(kq, (B, LQ, E), jnp.float32)
    key = jax.random.normal(kk, (B, LK, E), jnp.float32)
    value = jax.random.normal(kv, (B, LK, E), jnp.float32)

    mha = MultiheadAttentionPallas(k_par, embed_dim=E, num_heads=H)

    # full path (returns attention weights in final (B, H, Lq, Lk) layout)
    out, attnw = mha(query, key, value, block_b=2)   # grid (3, 1); last batch block partial
    out = jax.block_until_ready(out)
    attnw = jax.block_until_ready(attnw)

    # need_weights=False fast path (skips the attn-weights writeback entirely)
    out_fast, _ = mha(query, key, value, block_b=2, need_weights=False)
    out_fast = jax.block_until_ready(out_fast)

    ref_out, ref_attnw = mha.reference(query, key, value)
    ref_out = jax.block_until_ready(ref_out)

    assert out.shape == (B, LQ, E), out.shape
    assert attnw.shape == (B, H, LQ, LK), attnw.shape
    # tolerance accounts for bf16 MXU inputs vs the full-f32 reference
    assert jnp.allclose(out, ref_out, atol=1e-2, rtol=1e-2), \
        float(jnp.max(jnp.abs(out - ref_out)))
    assert jnp.allclose(attnw, ref_attnw, atol=1e-2, rtol=1e-2), \
        float(jnp.max(jnp.abs(attnw - ref_attnw)))
    assert jnp.allclose(out_fast, ref_out, atol=1e-2, rtol=1e-2), \
        float(jnp.max(jnp.abs(out_fast - ref_out)))

    print("KERNEL_OK")
</pallas_src>

<mosaic_0001>
module attributes {stable_mosaic.version = 11 : i64} {
  func.func @_mha_kernel(%arg0: i32, %arg1: i32, %arg2: memref<2x8x32xbf16, #tpu.memory_space<vmem>>, %arg3: memref<2x16x32xbf16, #tpu.memory_space<vmem>>, %arg4: memref<2x16x32xbf16, #tpu.memory_space<vmem>>, %arg5: memref<32x32xbf16, #tpu.memory_space<vmem>>, %arg6: memref<1x32xf32, #tpu.memory_space<vmem>>, %arg7: memref<32x32xbf16, #tpu.memory_space<vmem>>, %arg8: memref<1x32xf32, #tpu.memory_space<vmem>>, %arg9: memref<32x32xbf16, #tpu.memory_space<vmem>>, %arg10: memref<1x32xf32, #tpu.memory_space<vmem>>, %arg11: memref<32x32xbf16, #tpu.memory_space<vmem>>, %arg12: memref<1x32xf32, #tpu.memory_space<vmem>>, %arg13: memref<2x8x32xf32, #tpu.memory_space<vmem>>, %arg14: memref<2x4x8x16xf32, #tpu.memory_space<vmem>>, %arg15: memref<2x16x32xbf16, #tpu.memory_space<vmem>>, %arg16: memref<2x16x32xbf16, #tpu.memory_space<vmem>>) attributes {dimension_semantics = [#tpu.dimension_semantics<parallel>, #tpu.dimension_semantics<arbitrary>], iteration_bounds = array<i64: 3, 1>, scalar_prefetch = 0 : i64, scratch_operands = 2 : i64, tpu.core_type = #tpu.core_type<tc>, window_params = [{transform_indices = @transform_0, window_bounds = array<i64: 2, 8, 32>}, {transform_indices = @transform_1, window_bounds = array<i64: 2, 16, 32>}, {transform_indices = @transform_2, window_bounds = array<i64: 2, 16, 32>}, {pipeline_mode = #tpu.pipeline_mode<synchronous>, transform_indices = @transform_3, window_bounds = array<i64: 32, 32>}, {pipeline_mode = #tpu.pipeline_mode<synchronous>, transform_indices = @transform_4, window_bounds = array<i64: 1, 32>}, {pipeline_mode = #tpu.pipeline_mode<synchronous>, transform_indices = @transform_5, window_bounds = array<i64: 32, 32>}, {pipeline_mode = #tpu.pipeline_mode<synchronous>, transform_indices = @transform_6, window_bounds = array<i64: 1, 32>}, {pipeline_mode = #tpu.pipeline_mode<synchronous>, transform_indices = @transform_7, window_bounds = array<i64: 32, 32>}, {pipeline_mode = #tpu.pipeline_mode<synchronous>, transform_indices = @transform_8, window_bounds = array<i64: 1, 32>}, {pipeline_mode = #tpu.pipeline_mode<synchronous>, transform_indices = @transform_9, window_bounds = array<i64: 32, 32>}, {pipeline_mode = #tpu.pipeline_mode<synchronous>, transform_indices = @transform_10, window_bounds = array<i64: 1, 32>}, {transform_indices = @transform_11, window_bounds = array<i64: 2, 8, 32>}, {transform_indices = @transform_12, window_bounds = array<i64: 2, 4, 8, 16>}]} {
    %c0_i32 = arith.constant 0 : i32
    %0 = arith.cmpi eq, %arg1, %c0_i32 : i32
    %1 = arith.extui %0 : i1 to i32
    %c0_i32_0 = arith.constant 0 : i32
    %2 = arith.cmpi ne, %1, %c0_i32_0 : i32
    scf.if %2 {
      %c0_51 = arith.constant 0 : index
      %c0_52 = arith.constant 0 : index
      %c0_53 = arith.constant 0 : index
      %105 = vector.load %arg3[%c0_51, %c0_52, %c0_53] : memref<2x16x32xbf16, #tpu.memory_space<vmem>>, vector<2x16x32xbf16>
      %106 = vector.shape_cast %105 : vector<2x16x32xbf16> to vector<32x32xbf16>
      %c0_54 = arith.constant 0 : index
      %c0_55 = arith.constant 0 : index
      %c0_56 = arith.constant 0 : index
      %107 = vector.load %arg4[%c0_54, %c0_55, %c0_56] : memref<2x16x32xbf16, #tpu.memory_space<vmem>>, vector<2x16x32xbf16>
      %108 = vector.shape_cast %107 : vector<2x16x32xbf16> to vector<32x32xbf16>
      %c0_57 = arith.constant 0 : index
      %c0_58 = arith.constant 0 : index
      %109 = vector.load %arg7[%c0_57, %c0_58] : memref<32x32xbf16, #tpu.memory_space<vmem>>, vector<32x32xbf16>
      %cst_59 = arith.constant dense<0.000000e+00> : vector<32x32xf32>
      %110 = tpu.matmul %106, %109, %cst_59 {dimension_numbers = #tpu.dot_dimension_numbers<[1], [0], [0], [1], [0, 0, 1, 1], [], []>} : vector<32x32xbf16>, vector<32x32xbf16>, vector<32x32xf32> -> vector<32x32xf32>
      %c0_60 = arith.constant 0 : index
      %c0_61 = arith.constant 0 : index
      %111 = vector.load %arg8[%c0_60, %c0_61] : memref<1x32xf32, #tpu.memory_space<vmem>>, vector<1x32xf32>
      %112 = vector.broadcast %111 : vector<1x32xf32> to vector<32x32xf32>
      %113 = arith.addf %110, %112 : vector<32x32xf32>
      %c0_62 = arith.constant 0 : index
      %c0_63 = arith.constant 0 : index
      %114 = vector.load %arg9[%c0_62, %c0_63] : memref<32x32xbf16, #tpu.memory_space<vmem>>, vector<32x32xbf16>
      %cst_64 = arith.constant dense<0.000000e+00> : vector<32x32xf32>
      %115 = tpu.matmul %108, %114, %cst_64 {dimension_numbers = #tpu.dot_dimension_numbers<[1], [0], [0], [1], [0, 0, 1, 1], [], []>} : vector<32x32xbf16>, vector<32x32xbf16>, vector<32x32xf32> -> vector<32x32xf32>
      %c0_65 = arith.constant 0 : index
      %c0_66 = arith.constant 0 : index
      %116 = vector.load %arg10[%c0_65, %c0_66] : memref<1x32xf32, #tpu.memory_space<vmem>>, vector<1x32xf32>
      %117 = vector.broadcast %116 : vector<1x32xf32> to vector<32x32xf32>
      %118 = arith.addf %115, %117 : vector<32x32xf32>
      %119 = vector.shape_cast %113 : vector<32x32xf32> to vector<2x16x32xf32>
      %120 = arith.truncf %119 : vector<2x16x32xf32> to vector<2x16x32xbf16>
      %c0_67 = arith.constant 0 : index
      %c0_68 = arith.constant 0 : index
      %c0_69 = arith.constant 0 : index
      %121 = vector.load %arg15[%c0_67, %c0_68, %c0_69] : memref<2x16x32xbf16, #tpu.memory_space<vmem>>, vector<2x16x32xbf16>
      tpu.vector_store %arg15[%c0_67, %c0_68, %c0_69], %120 {strides = array<i32>} : memref<2x16x32xbf16, #tpu.memory_space<vmem>>, vector<2x16x32xbf16>,
      %122 = vector.shape_cast %118 : vector<32x32xf32> to vector<2x16x32xf32>
      %123 = arith.truncf %122 : vector<2x16x32xf32> to vector<2x16x32xbf16>
      %c0_70 = arith.constant 0 : index
      %c0_71 = arith.constant 0 : index
      %c0_72 = arith.constant 0 : index
      %124 = vector.load %arg16[%c0_70, %c0_71, %c0_72] : memref<2x16x32xbf16, #tpu.memory_space<vmem>>, vector<2x16x32xbf16>
      tpu.vector_store %arg16[%c0_70, %c0_71, %c0_72], %123 {strides = array<i32>} : memref<2x16x32xbf16, #tpu.memory_space<vmem>>, vector<2x16x32xbf16>,
    } else {
    }
    %c0 = arith.constant 0 : index
    %c0_1 = arith.constant 0 : index
    %c0_2 = arith.constant 0 : index
    %3 = vector.load %arg2[%c0, %c0_1, %c0_2] : memref<2x8x32xbf16, #tpu.memory_space<vmem>>, vector<2x8x32xbf16>
    %4 = vector.shape_cast %3 : vector<2x8x32xbf16> to vector<16x32xbf16>
    %c0_3 = arith.constant 0 : index
    %c0_4 = arith.constant 0 : index
    %5 = vector.load %arg5[%c0_3, %c0_4] : memref<32x32xbf16, #tpu.memory_space<vmem>>, vector<32x32xbf16>
    %cst = arith.constant dense<0.000000e+00> : vector<16x32xf32>
    %6 = tpu.matmul %4, %5, %cst {dimension_numbers = #tpu.dot_dimension_numbers<[1], [0], [0], [1], [0, 0, 1, 1], [], []>} : vector<16x32xbf16>, vector<32x32xbf16>, vector<16x32xf32> -> vector<16x32xf32>
    %c0_5 = arith.constant 0 : index
    %c0_6 = arith.constant 0 : index
    %7 = vector.load %arg6[%c0_5, %c0_6] : memref<1x32xf32, #tpu.memory_space<vmem>>, vector<1x32xf32>
    %8 = vector.broadcast %7 : vector<1x32xf32> to vector<16x32xf32>
    %9 = arith.addf %6, %8 : vector<16x32xf32>
    %cst_7 = arith.constant 0.353553385 : f32
    %10 = vector.broadcast %cst_7 : f32 to vector<16x32xf32>
    %11 = arith.mulf %9, %10 : vector<16x32xf32>
    %12 = arith.truncf %11 : vector<16x32xf32> to vector<16x32xbf16>
    %13 = vector.shape_cast %12 : vector<16x32xbf16> to vector<2x8x32xbf16>
    %c0_8 = arith.constant 0 : index
    %c0_9 = arith.constant 0 : index
    %c0_10 = arith.constant 0 : index
    %14 = vector.load %arg15[%c0_8, %c0_9, %c0_10] : memref<2x16x32xbf16, #tpu.memory_space<vmem>>, vector<2x16x32xbf16>
    %c0_11 = arith.constant 0 : index
    %c0_12 = arith.constant 0 : index
    %c0_13 = arith.constant 0 : index
    %15 = vector.load %arg16[%c0_11, %c0_12, %c0_13] : memref<2x16x32xbf16, #tpu.memory_space<vmem>>, vector<2x16x32xbf16>
    %16 = vector.extract_strided_slice %13 {offsets = [0, 0, 0], sizes = [2, 8, 8], strides = [1, 1, 1]} : vector<2x8x32xbf16> to vector<2x8x8xbf16>
    %17 = vector.extract_strided_slice %14 {offsets = [0, 0, 0], sizes = [2, 16, 8], strides = [1, 1, 1]} : vector<2x16x32xbf16> to vector<2x16x8xbf16>
    %18 = vector.extract_strided_slice %15 {offsets = [0, 0, 0], sizes = [2, 16, 8], strides = [1, 1, 1]} : vector<2x16x32xbf16> to vector<2x16x8xbf16>
    "tpu.trace_start"() <{level = 10 : i32, message = "bqd,bkd->bqk"}> : () -> ()
    %cst_14 = arith.constant dense<0.000000e+00> : vector<2x8x16xf32>
    %19 = tpu.matmul %16, %17, %cst_14 {dimension_numbers = #tpu.dot_dimension_numbers<[2], [2], [1], [1], [0, 0, 0, 1, 1, 1], [0], [0]>} : vector<2x8x8xbf16>, vector<2x16x8xbf16>, vector<2x8x16xf32> -> vector<2x8x16xf32>
    "tpu.trace_stop"() : () -> ()
    %cst_15 = arith.constant dense<0xFF800000> : vector<2x8xf32>
    %20 = vector.multi_reduction <maximumf>, %19, %cst_15 [2] : vector<2x8x16xf32> to vector<2x8xf32>
    %21 = vector.shape_cast %20 : vector<2x8xf32> to vector<2x8x1xf32>
    %22 = vector.broadcast %21 : vector<2x8x1xf32> to vector<2x8x16xf32>
    %23 = arith.subf %19, %22 : vector<2x8x16xf32>
    %24 = math.exp %23 : vector<2x8x16xf32>
    %cst_16 = arith.constant dense<0.000000e+00> : vector<2x8xf32>
    %25 = vector.multi_reduction <add>, %24, %cst_16 [2] : vector<2x8x16xf32> to vector<2x8xf32>
    %26 = vector.shape_cast %25 : vector<2x8xf32> to vector<2x8x1xf32>
    %27 = tpu.reciprocal %26 : vector<2x8x1xf32> -> vector<2x8x1xf32>
    %28 = vector.broadcast %27 : vector<2x8x1xf32> to vector<2x8x16xf32>
    %29 = arith.mulf %24, %28 : vector<2x8x16xf32>
    %c0_17 = arith.constant 0 : index
    %c0_18 = arith.constant 0 : index
    %c0_19 = arith.constant 0 : index
    %c0_20 = arith.constant 0 : index
    %30 = vector.load %arg14[%c0_17, %c0_18, %c0_19, %c0_20] : memref<2x4x8x16xf32, #tpu.memory_space<vmem>>, vector<2x1x8x16xf32>
    %31 = vector.shape_cast %30 : vector<2x1x8x16xf32> to vector<2x8x16xf32>
    %32 = vector.shape_cast %29 : vector<2x8x16xf32> to vector<2x1x8x16xf32>
    tpu.vector_store %arg14[%c0_17, %c0_18, %c0_19, %c0_20], %32 {strides = array<i32>} : memref<2x4x8x16xf32, #tpu.memory_space<vmem>>, vector<2x1x8x16xf32>,
    %33 = arith.truncf %29 : vector<2x8x16xf32> to vector<2x8x16xbf16>
    "tpu.trace_start"() <{level = 10 : i32, message = "bqk,bkd->bqd"}> : () -> ()
    %cst_21 = arith.constant dense<0.000000e+00> : vector<2x8x8xf32>
    %34 = tpu.matmul %33, %18, %cst_21 {dimension_numbers = #tpu.dot_dimension_numbers<[2], [1], [1], [2], [0, 0, 0, 1, 1, 2], [0], [0]>} : vector<2x8x16xbf16>, vector<2x16x8xbf16>, vector<2x8x8xf32> -> vector<2x8x8xf32>
    "tpu.trace_stop"() : () -> ()
    %35 = arith.truncf %34 : vector<2x8x8xf32> to vector<2x8x8xbf16>
    %36 = vector.extract_strided_slice %13 {offsets = [0, 0, 8], sizes = [2, 8, 8], strides = [1, 1, 1]} : vector<2x8x32xbf16> to vector<2x8x8xbf16>
    %37 = vector.extract_strided_slice %14 {offsets = [0, 0, 8], sizes = [2, 16, 8], strides = [1, 1, 1]} : vector<2x16x32xbf16> to vector<2x16x8xbf16>
    %38 = vector.extract_strided_slice %15 {offsets = [0, 0, 8], sizes = [2, 16, 8], strides = [1, 1, 1]} : vector<2x16x32xbf16> to vector<2x16x8xbf16>
    "tpu.trace_start"() <{level = 10 : i32, message = "bqd,bkd->bqk"}> : () -> ()
    %cst_22 = arith.constant dense<0.000000e+00> : vector<2x8x16xf32>
    %39 = tpu.matmul %36, %37, %cst_22 {dimension_numbers = #tpu.dot_dimension_numbers<[2], [2], [1], [1], [0, 0, 0, 1, 1, 1], [0], [0]>} : vector<2x8x8xbf16>, vector<2x16x8xbf16>, vector<2x8x16xf32> -> vector<2x8x16xf32>
    "tpu.trace_stop"() : () -> ()
    %cst_23 = arith.constant dense<0xFF800000> : vector<2x8xf32>
    %40 = vector.multi_reduction <maximumf>, %39, %cst_23 [2] : vector<2x8x16xf32> to vector<2x8xf32>
    %41 = vector.shape_cast %40 : vector<2x8xf32> to vector<2x8x1xf32>
    %42 = vector.broadcast %41 : vector<2x8x1xf32> to vector<2x8x16xf32>
    %43 = arith.subf %39, %42 : vector<2x8x16xf32>
    %44 = math.exp %43 : vector<2x8x16xf32>
    %cst_24 = arith.constant dense<0.000000e+00> : vector<2x8xf32>
    %45 = vector.multi_reduction <add>, %44, %cst_24 [2] : vector<2x8x16xf32> to vector<2x8xf32>
    %46 = vector.shape_cast %45 : vector<2x8xf32> to vector<2x8x1xf32>
    %47 = tpu.reciprocal %46 : vector<2x8x1xf32> -> vector<2x8x1xf32>
    %48 = vector.broadcast %47 : vector<2x8x1xf32> to vector<2x8x16xf32>
    %49 = arith.mulf %44, %48 : vector<2x8x16xf32>
    %c0_25 = arith.constant 0 : index
    %c1 = arith.constant 1 : index
    %c0_26 = arith.constant 0 : index
    %c0_27 = arith.constant 0 : index
    %50 = vector.load %arg14[%c0_25, %c1, %c0_26, %c0_27] : memref<2x4x8x16xf32, #tpu.memory_space<vmem>>, vector<2x1x8x16xf32>
    %51 = vector.shape_cast %50 : vector<2x1x8x16xf32> to vector<2x8x16xf32>
    %52 = vector.shape_cast %49 : vector<2x8x16xf32> to vector<2x1x8x16xf32>
    tpu.vector_store %arg14[%c0_25, %c1, %c0_26, %c0_27], %52 {strides = array<i32>} : memref<2x4x8x16xf32, #tpu.memory_space<vmem>>, vector<2x1x8x16xf32>,
    %53 = arith.truncf %49 : vector<2x8x16xf32> to vector<2x8x16xbf16>
    "tpu.trace_start"() <{level = 10 : i32, message = "bqk,bkd->bqd"}> : () -> ()
    %cst_28 = arith.constant dense<0.000000e+00> : vector<2x8x8xf32>
    %54 = tpu.matmul %53, %38, %cst_28 {dimension_numbers = #tpu.dot_dimension_numbers<[2], [1], [1], [2], [0, 0, 0, 1, 1, 2], [0], [0]>} : vector<2x8x16xbf16>, vector<2x16x8xbf16>, vector<2x8x8xf32> -> vector<2x8x8xf32>
    "tpu.trace_stop"() : () -> ()
    %55 = arith.truncf %54 : vector<2x8x8xf32> to vector<2x8x8xbf16>
    %56 = vector.extract_strided_slice %13 {offsets = [0, 0, 16], sizes = [2, 8, 8], strides = [1, 1, 1]} : vector<2x8x32xbf16> to vector<2x8x8xbf16>
    %57 = vector.extract_strided_slice %14 {offsets = [0, 0, 16], sizes = [2, 16, 8], strides = [1, 1, 1]} : vector<2x16x32xbf16> to vector<2x16x8xbf16>
    %58 = vector.extract_strided_slice %15 {offsets = [0, 0, 16], sizes = [2, 16, 8], strides = [1, 1, 1]} : vector<2x16x32xbf16> to vector<2x16x8xbf16>
    "tpu.trace_start"() <{level = 10 : i32, message = "bqd,bkd->bqk"}> : () -> ()
    %cst_29 = arith.constant dense<0.000000e+00> : vector<2x8x16xf32>
    %59 = tpu.matmul %56, %57, %cst_29 {dimension_numbers = #tpu.dot_dimension_numbers<[2], [2], [1], [1], [0, 0, 0, 1, 1, 1], [0], [0]>} : vector<2x8x8xbf16>, vector<2x16x8xbf16>, vector<2x8x16xf32> -> vector<2x8x16xf32>
    "tpu.trace_stop"() : () -> ()
    %cst_30 = arith.constant dense<0xFF800000> : vector<2x8xf32>
    %60 = vector.multi_reduction <maximumf>, %59, %cst_30 [2] : vector<2x8x16xf32> to vector<2x8xf32>
    %61 = vector.shape_cast %60 : vector<2x8xf32> to vector<2x8x1xf32>
    %62 = vector.broadcast %61 : vector<2x8x1xf32> to vector<2x8x16xf32>
    %63 = arith.subf %59, %62 : vector<2x8x16xf32>
    %64 = math.exp %63 : vector<2x8x16xf32>
    %cst_31 = arith.constant dense<0.000000e+00> : vector<2x8xf32>
    %65 = vector.multi_reduction <add>, %64, %cst_31 [2] : vector<2x8x16xf32> to vector<2x8xf32>
    %66 = vector.shape_cast %65 : vector<2x8xf32> to vector<2x8x1xf32>
    %67 = tpu.reciprocal %66 : vector<2x8x1xf32> -> vector<2x8x1xf32>
    %68 = vector.broadcast %67 : vector<2x8x1xf32> to vector<2x8x16xf32>
    %69 = arith.mulf %64, %68 : vector<2x8x16xf32>
    %c0_32 = arith.constant 0 : index
    %c2 = arith.constant 2 : index
    %c0_33 = arith.constant 0 : index
    %c0_34 = arith.constant 0 : index
    %70 = vector.load %arg14[%c0_32, %c2, %c0_33, %c0_34] : memref<2x4x8x16xf32, #tpu.memory_space<vmem>>, vector<2x1x8x16xf32>
    %71 = vector.shape_cast %70 : vector<2x1x8x16xf32> to vector<2x8x16xf32>
    %72 = vector.shape_cast %69 : vector<2x8x16xf32> to vector<2x1x8x16xf32>
    tpu.vector_store %arg14[%c0_32, %c2, %c0_33, %c0_34], %72 {strides = array<i32>} : memref<2x4x8x16xf32, #tpu.memory_space<vmem>>, vector<2x1x8x16xf32>,
    %73 = arith.truncf %69 : vector<2x8x16xf32> to vector<2x8x16xbf16>
    "tpu.trace_start"() <{level = 10 : i32, message = "bqk,bkd->bqd"}> : () -> ()
    %cst_35 = arith.constant dense<0.000000e+00> : vector<2x8x8xf32>
    %74 = tpu.matmul %73, %58, %cst_35 {dimension_numbers = #tpu.dot_dimension_numbers<[2], [1], [1], [2], [0, 0, 0, 1, 1, 2], [0], [0]>} : vector<2x8x16xbf16>, vector<2x16x8xbf16>, vector<2x8x8xf32> -> vector<2x8x8xf32>
    "tpu.trace_stop"() : () -> ()
    %75 = arith.truncf %74 : vector<2x8x8xf32> to vector<2x8x8xbf16>
    %76 = vector.extract_strided_slice %13 {offsets = [0, 0, 24], sizes = [2, 8, 8], strides = [1, 1, 1]} : vector<2x8x32xbf16> to vector<2x8x8xbf16>
    %77 = vector.extract_strided_slice %14 {offsets = [0, 0, 24], sizes = [2, 16, 8], strides = [1, 1, 1]} : vector<2x16x32xbf16> to vector<2x16x8xbf16>
    %78 = vector.extract_strided_slice %15 {offsets = [0, 0, 24], sizes = [2, 16, 8], strides = [1, 1, 1]} : vector<2x16x32xbf16> to vector<2x16x8xbf16>
    "tpu.trace_start"() <{level = 10 : i32, message = "bqd,bkd->bqk"}> : () -> ()
    %cst_36 = arith.constant dense<0.000000e+00> : vector<2x8x16xf32>
    %79 = tpu.matmul %76, %77, %cst_36 {dimension_numbers = #tpu.dot_dimension_numbers<[2], [2], [1], [1], [0, 0, 0, 1, 1, 1], [0], [0]>} : vector<2x8x8xbf16>, vector<2x16x8xbf16>, vector<2x8x16xf32> -> vector<2x8x16xf32>
    "tpu.trace_stop"() : () -> ()
    %cst_37 = arith.constant dense<0xFF800000> : vector<2x8xf32>
    %80 = vector.multi_reduction <maximumf>, %79, %cst_37 [2] : vector<2x8x16xf32> to vector<2x8xf32>
    %81 = vector.shape_cast %80 : vector<2x8xf32> to vector<2x8x1xf32>
    %82 = vector.broadcast %81 : vector<2x8x1xf32> to vector<2x8x16xf32>
    %83 = arith.subf %79, %82 : vector<2x8x16xf32>
    %84 = math.exp %83 : vector<2x8x16xf32>
    %cst_38 = arith.constant dense<0.000000e+00> : vector<2x8xf32>
    %85 = vector.multi_reduction <add>, %84, %cst_38 [2] : vector<2x8x16xf32> to vector<2x8xf32>
    %86 = vector.shape_cast %85 : vector<2x8xf32> to vector<2x8x1xf32>
    %87 = tpu.reciprocal %86 : vector<2x8x1xf32> -> vector<2x8x1xf32>
    %88 = vector.broadcast %87 : vector<2x8x1xf32> to vector<2x8x16xf32>
    %89 = arith.mulf %84, %88 : vector<2x8x16xf32>
    %c0_39 = arith.constant 0 : index
    %c3 = arith.constant 3 : index
    %c0_40 = arith.constant 0 : index
    %c0_41 = arith.constant 0 : index
    %90 = vector.load %arg14[%c0_39, %c3, %c0_40, %c0_41] : memref<2x4x8x16xf32, #tpu.memory_space<vmem>>, vector<2x1x8x16xf32>
    %91 = vector.shape_cast %90 : vector<2x1x8x16xf32> to vector<2x8x16xf32>
    %92 = vector.shape_cast %89 : vector<2x8x16xf32> to vector<2x1x8x16xf32>
    tpu.vector_store %arg14[%c0_39, %c3, %c0_40, %c0_41], %92 {strides = array<i32>} : memref<2x4x8x16xf32, #tpu.memory_space<vmem>>, vector<2x1x8x16xf32>,
    %93 = arith.truncf %89 : vector<2x8x16xf32> to vector<2x8x16xbf16>
    "tpu.trace_start"() <{level = 10 : i32, message = "bqk,bkd->bqd"}> : () -> ()
    %cst_42 = arith.constant dense<0.000000e+00> : vector<2x8x8xf32>
    %94 = tpu.matmul %93, %78, %cst_42 {dimension_numbers = #tpu.dot_dimension_numbers<[2], [1], [1], [2], [0, 0, 0, 1, 1, 2], [0], [0]>} : vector<2x8x16xbf16>, vector<2x16x8xbf16>, vector<2x8x8xf32> -> vector<2x8x8xf32>
    "tpu.trace_stop"() : () -> ()
    %95 = arith.truncf %94 : vector<2x8x8xf32> to vector<2x8x8xbf16>
    %96 = tpu.concatenate %35, %55, %75, %95 in 2 : vector<2x8x8xbf16>, vector<2x8x8xbf16>, vector<2x8x8xbf16>, vector<2x8x8xbf16> -> vector<2x8x32xbf16>
    %97 = vector.shape_cast %96 : vector<2x8x32xbf16> to vector<16x32xbf16>
    %c0_43 = arith.constant 0 : index
    %c0_44 = arith.constant 0 : index
    %98 = vector.load %arg11[%c0_43, %c0_44] : memref<32x32xbf16, #tpu.memory_space<vmem>>, vector<32x32xbf16>
    %cst_45 = arith.constant dense<0.000000e+00> : vector<16x32xf32>
    %99 = tpu.matmul %97, %98, %cst_45 {dimension_numbers = #tpu.dot_dimension_numbers<[1], [0], [0], [1], [0, 0, 1, 1], [], []>} : vector<16x32xbf16>, vector<32x32xbf16>, vector<16x32xf32> -> vector<16x32xf32>
    %c0_46 = arith.constant 0 : index
    %c0_47 = arith.constant 0 : index
    %100 = vector.load %arg12[%c0_46, %c0_47] : memref<1x32xf32, #tpu.memory_space<vmem>>, vector<1x32xf32>
    %101 = vector.broadcast %100 : vector<1x32xf32> to vector<16x32xf32>
    %102 = arith.addf %99, %101 : vector<16x32xf32>
    %103 = vector.shape_cast %102 : vector<16x32xf32> to vector<2x8x32xf32>
    %c0_48 = arith.constant 0 : index
    %c0_49 = arith.constant 0 : index
    %c0_50 = arith.constant 0 : index
    %104 = vector.load %arg13[%c0_48, %c0_49, %c0_50] : memref<2x8x32xf32, #tpu.memory_space<vmem>>, vector<2x8x32xf32>
    tpu.vector_store %arg13[%c0_48, %c0_49, %c0_50], %103 {strides = array<i32>} : memref<2x8x32xf32, #tpu.memory_space<vmem>>, vector<2x8x32xf32>,
    return
  }
  func.func @transform_0(%arg0: i32, %arg1: i32) -> (i32, i32, i32) {
    %c0_i32 = arith.constant 0 : i32
    %c0_i32_0 = arith.constant 0 : i32
    return %arg0, %arg1, %c0_i32 : i32, i32, i32
  }
  func.func @transform_1(%arg0: i32, %arg1: i32) -> (i32, i32, i32) {
    %c0_i32 = arith.constant 0 : i32
    %c0_i32_0 = arith.constant 0 : i32
    %c0_i32_1 = arith.constant 0 : i32
    return %arg0, %c0_i32, %c0_i32_0 : i32, i32, i32
  }
  func.func @transform_2(%arg0: i32, %arg1: i32) -> (i32, i32, i32) {
    %c0_i32 = arith.constant 0 : i32
    %c0_i32_0 = arith.constant 0 : i32
    %c0_i32_1 = arith.constant 0 : i32
    return %arg0, %c0_i32, %c0_i32_0 : i32, i32, i32
  }
  func.func @transform_3(%arg0: i32, %arg1: i32) -> (i32, i32) {
    %c0_i32 = arith.constant 0 : i32
    %c0_i32_0 = arith.constant 0 : i32
    %c0_i32_1 = arith.constant 0 : i32
    return %c0_i32, %c0_i32_0 : i32, i32
  }
  func.func @transform_4(%arg0: i32, %arg1: i32) -> (i32, i32) {
    %c0_i32 = arith.constant 0 : i32
    %c0_i32_0 = arith.constant 0 : i32
    %c0_i32_1 = arith.constant 0 : i32
    return %c0_i32, %c0_i32_0 : i32, i32
  }
  func.func @transform_5(%arg0: i32, %arg1: i32) -> (i32, i32) {
    %c0_i32 = arith.constant 0 : i32
    %c0_i32_0 = arith.constant 0 : i32
    %c0_i32_1 = arith.constant 0 : i32
    return %c0_i32, %c0_i32_0 : i32, i32
  }
  func.func @transform_6(%arg0: i32, %arg1: i32) -> (i32, i32) {
    %c0_i32 = arith.constant 0 : i32
    %c0_i32_0 = arith.constant 0 : i32
    %c0_i32_1 = arith.constant 0 : i32
    return %c0_i32, %c0_i32_0 : i32, i32
  }
  func.func @transform_7(%arg0: i32, %arg1: i32) -> (i32, i32) {
    %c0_i32 = arith.constant 0 : i32
    %c0_i32_0 = arith.constant 0 : i32
    %c0_i32_1 = arith.constant 0 : i32
    return %c0_i32, %c0_i32_0 : i32, i32
  }
  func.func @transform_8(%arg0: i32, %arg1: i32) -> (i32, i32) {
    %c0_i32 = arith.constant 0 : i32
    %c0_i32_0 = arith.constant 0 : i32
    %c0_i32_1 = arith.constant 0 : i32
    return %c0_i32, %c0_i32_0 : i32, i32
  }
  func.func @transform_9(%arg0: i32, %arg1: i32) -> (i32, i32) {
    %c0_i32 = arith.constant 0 : i32
    %c0_i32_0 = arith.constant 0 : i32
    %c0_i32_1 = arith.constant 0 : i32
    return %c0_i32, %c0_i32_0 : i32, i32
  }
  func.func @transform_10(%arg0: i32, %arg1: i32) -> (i32, i32) {
    %c0_i32 = arith.constant 0 : i32
    %c0_i32_0 = arith.constant 0 : i32
    %c0_i32_1 = arith.constant 0 : i32
    return %c0_i32, %c0_i32_0 : i32, i32
  }
  func.func @transform_11(%arg0: i32, %arg1: i32) -> (i32, i32, i32) {
    %c0_i32 = arith.constant 0 : i32
    %c0_i32_0 = arith.constant 0 : i32
    return %arg0, %arg1, %c0_i32 : i32, i32, i32
  }
  func.func @transform_12(%arg0: i32, %arg1: i32) -> (i32, i32, i32, i32) {
    %c0_i32 = arith.constant 0 : i32
    %c0_i32_0 = arith.constant 0 : i32
    %c0_i32_1 = arith.constant 0 : i32
    return %arg0, %c0_i32, %arg1, %c0_i32_0 : i32, i32, i32, i32
  }
}

</mosaic_0001>

<llo_original>
// kernel: tpu_custom_call.1
$region0: #{tpu_custom_call.1}
  #allocation0 [shape = 'u32[]', space=smem, size = 0x4, offset = 0x4, fixed_abs, tag = 'smem constant byte address 0x4 - core index']
  #allocation1 [shape = 'u32[144,128]{1,0:T(1,128)}', space=vmem, size = 0x12000, scoped, tag = 'internal scratch']
  #allocation2 [shape = 'bf16[2,16,32]{2,1,0:T(8,128)(2,1)}', space=vmem, size = 0x2000, scoped, tag = 'scratch operand']
  #allocation3 [shape = 'bf16[2,16,32]{2,1,0:T(8,128)(2,1)}', space=vmem, size = 0x2000, scoped, tag = 'scratch operand']
  %s0 = inlined_call_operand.hbm [shape: bf16[5,8,32], index: 0, kind: input, shape index: {}]
  %s1 = inlined_call_operand.hbm [shape: bf16[5,16,32], index: 1, kind: input, shape index: {}]
  %s2 = inlined_call_operand.hbm [shape: bf16[5,16,32], index: 2, kind: input, shape index: {}]
  %s3 = inlined_call_operand.hbm [shape: bf16[32,32], index: 3, kind: input, shape index: {}]
  %s4 = inlined_call_operand.hbm [shape: f32[1,32], index: 4, kind: input, shape index: {}]
  %s5 = inlined_call_operand.hbm [shape: bf16[32,32], index: 5, kind: input, shape index: {}]
  %s6 = inlined_call_operand.hbm [shape: f32[1,32], index: 6, kind: input, shape index: {}]
  %s7 = inlined_call_operand.hbm [shape: bf16[32,32], index: 7, kind: input, shape index: {}]
  %s8 = inlined_call_operand.hbm [shape: f32[1,32], index: 8, kind: input, shape index: {}]
  %s9 = inlined_call_operand.vmem [shape: bf16[32,32], index: 9, kind: input, shape index: {}]
  %s10 = inlined_call_operand.vmem [shape: f32[1,32], index: 10, kind: input, shape index: {}]
  %s11 = inlined_call_operand.hbm [shape: f32[5,8,32], index: 11, kind: output, shape index: {0}]
  %s12 = inlined_call_operand.hbm [shape: f32[5,4,8,16], index: 12, kind: output, shape index: {1}]
  %13 = xla_tuple %s11, %s12
  %s14 = sld [smem:[#allocation0]]
  $region125: #{tpu_custom_call.1} parent=0
    _
  %s16 = ssub.s32 1, %s14
  %s17 = scalar_select 0, %s16, %s14
  $region1: #{tpu_custom_call.1} parent=0
    #allocation4 [shape = 'u8[8192]{0}', space=vmem, size = 0x2000, scoped, tag = 'input window, operand 0']
    #allocation5 [shape = 's32[2]{0}', space=sflag, size = 0x8, scoped, tag = 'scoped memory for tpu_custom_call.1']
    #allocation6 [shape = 's32[2]{0}', space=sflag, size = 0x8, scoped, tag = 'scoped memory for tpu_custom_call.1']
    #allocation7 [shape = 'u8[16384]{0}', space=vmem, size = 0x4000, scoped, tag = 'input window, operand 1']
    #allocation8 [shape = 's32[2]{0}', space=sflag, size = 0x8, scoped, tag = 'scoped memory for tpu_custom_call.1']
    #allocation9 [shape = 'u8[16384]{0}', space=vmem, size = 0x4000, scoped, tag = 'input window, operand 2']
    #allocation10 [shape = 'u8[8192]{0}', space=vmem, size = 0x2000, scoped, tag = 'input window, operand 3, single buffered']
    #allocation11 [shape = 's32[1]{0}', space=sflag, size = 0x4, scoped, tag = 'scoped memory for tpu_custom_call.1']
    #allocation12 [shape = 'u8[512]{0}', space=vmem, size = 0x400, scoped, tag = 'input window, operand 4, single buffered']
    #allocation13 [shape = 'u8[8192]{0}', space=vmem, size = 0x2000, scoped, tag = 'input window, operand 5, single buffered']
    #allocation14 [shape = 's32[1]{0}', space=sflag, size = 0x4, scoped, tag = 'scoped memory for tpu_custom_call.1']
    #allocation15 [shape = 'u8[512]{0}', space=vmem, size = 0x400, scoped, tag = 'input window, operand 6, single buffered']
    #allocation16 [shape = 'u8[8192]{0}', space=vmem, size = 0x2000, scoped, tag = 'input window, operand 7, single buffered']
    #allocation17 [shape = 's32[1]{0}', space=sflag, size = 0x4, scoped, tag = 'scoped memory for tpu_custom_call.1']
    #allocation18 [shape = 'u8[512]{0}', space=vmem, size = 0x400, scoped, tag = 'input window, operand 8, single buffered']
    #allocation19 [shape = 'u8[16384]{0}', space=vmem, size = 0x4000, scoped, tag = 'output window, operand 0']
    #allocation20 [shape = 'u8[65536]{0}', space=vmem, size = 0x10000, scoped, tag = 'output window, operand 1']
    #allocation21 [shape = 's32[2]{0}', space=sflag, size = 0x8, scoped, tag = 'scoped memory for tpu_custom_call.1']
    %18 = vsyncpa [#allocation5], 0
    %s19 = scalar_lea.sflag [#allocation5], 1
    %20 = vsyncpa %s19, 0
    %21 = vsyncpa [#allocation8], 0
    %s22 = scalar_lea.sflag [#allocation8], 1
    %23 = vsyncpa %s22, 0
    %24 = vsyncpa [#allocation11], 0
    %25 = vsyncpa [#allocation14], 0
    %26 = vsyncpa [#allocation17], 0
    %27 = vsyncpa [#allocation6], 0
    %s28 = scalar_lea.sflag [#allocation6], 1
    %29 = vsyncpa %s28, 0
    %30 = vsyncpa [#allocation21], 0
    %s31 = scalar_lea.sflag [#allocation21], 1
    %32 = vsyncpa %s31, 0
    loop: start=0, step=1, limit=5
    $region2: #{tpu_custom_call.1} parent=1 // loop_pre_header
      _
    $region3: #{tpu_custom_call.1} parent=1 // loop_header
      %s34 = sphi 0, %s38
      %p35 = scmp.ge.s32.totalorder %s34, 5
      %s41 = sphi 0, %s53
      %s42 = sphi 0, %s49
      %s43 = sphi 0, %s41
      %s44 = sphi 0, %s42
      %s45 = sphi 0, %s43
      %s46 = sphi 0, %s44
      %s58 = sphi 0, %s60
      %s61 = sphi 0, %s58
      %s62 = sphi 0, %s61
      %s78 = sphi 0, %s62
      %s84 = sphi 0, %s86
      %s87 = sphi 0, %s84
      %s88 = sphi 0, %s87
      %s104 = sphi 0, %s88
      %s110 = sphi 0, %s112
      %s113 = sphi 0, %s110
      %s114 = sphi 0, %s113
      %s130 = sphi 0, %s114
      %s134 = sphi 0, %s134
      %s136 = sphi 0, %s134
      %s137 = sphi 0, %s136
      %s151 = sphi 0, %s137
      %s155 = sphi 0, %s155
      %s157 = sphi 0, %s155
      %s158 = sphi 0, %s157
      %s172 = sphi 0, %s158
      %s176 = sphi 0, %s176
      %s178 = sphi 0, %s176
      %s179 = sphi 0, %s178
      %s193 = sphi 0, %s179
      %s197 = sphi 0, %s197
      %s199 = sphi 0, %s197
      %s200 = sphi 0, %s199
      %s214 = sphi 0, %s200
      %s218 = sphi 0, %s218
      %s220 = sphi 0, %s218
      %s221 = sphi 0, %s220
      %s235 = sphi 0, %s221
      %s239 = sphi 0, %s239
      %s241 = sphi 0, %s239
      %s242 = sphi 0, %s241
      %s256 = sphi 0, %s242
      %s260 = sphi 0, %s260
      %s262 = sphi 0, %s260
      %s263 = sphi 0, %s262
      %s277 = sphi 0, %s263
      %s281 = sphi 0, %s281
      %s283 = sphi 0, %s281
      %s284 = sphi 0, %s283
      %s298 = sphi 0, %s284
      %s306 = sphi 0, %s308
      %s309 = sphi 0, %s306
      %s310 = sphi 0, %s309
      %s326 = sphi 0, %s310
      %s334 = sphi 0, %s336
      %s337 = sphi 0, %s334
      %s338 = sphi 0, %s337
      %s354 = sphi 0, %s338
    $region4: #{tpu_custom_call.1} parent=1 // loop_header_branch
      %37 = sbr.rel (%p35) target = $region8
    $region5: #{tpu_custom_call.1} parent=1 // loop_body
      %s39 = ssub.s32 %s34, 1
      %s40 = ssub.s32 %s34, 2
      %s47 = sadd.s32 1, %s42
      %p48 = scmp.ge.s32.totalorder %s47, 1
      %s49 = scalar_select %p48, 0, %s47
      %s50 = sadd.s32 1, %s41
      %s51 = scalar_select %p48, %s50, %s41
      %p52 = scmp.ge.s32.totalorder %s51, 3
      %s53 = scalar_select %p52, 0, %s51
      %s54 = ssub.s32 %s41, %s53
      %s55 = ssub.s32 %s42, %s49
      %s56 = sor.u32 %s54, %s55
      %p57 = scmp.eq.s32.totalorder %s56, 0
      %s59 = sadd.s32 %s58, 1
      %s60 = scalar_select %p57, %s58, %s59
      %p63 = pneg %p57
      %p64 = scmp.eq.s32.totalorder %s34, 2
      %p65 = por %p63, %p64
      %p66 = scmp.ne.s32.totalorder %s58, %s61
      %p67 = scmp.eq.s32.totalorder %s34, 0
      %p68 = por %p66, %p67
      %p69 = scmp.ne.s32.totalorder %s58, %s61
      %p70 = scmp.eq.s32.totalorder %s39, 2
      %p71 = por %p69, %p70
      %p72 = scmp.ne.s32.totalorder %s61, %s62
      %p73 = scmp.eq.s32.totalorder %s39, 0
      %p74 = por %p72, %p73
      %p75 = scmp.ne.s32.totalorder %s61, %s62
      %p76 = scmp.eq.s32.totalorder %s40, 2
      %p77 = por %p75, %p76
      %p79 = scmp.ne.s32.totalorder %s62, %s78
      %p80 = scmp.eq.s32.totalorder %s40, 0
      %p81 = por %p79, %p80
      %s82 = ssub.s32 %s41, %s53
      %p83 = scmp.eq.s32.totalorder %s82, 0
      %s85 = sadd.s32 %s84, 1
      %s86 = scalar_select %p83, %s84, %s85
      %p89 = pneg %p83
      %p90 = scmp.eq.s32.totalorder %s34, 2
      %p91 = por %p89, %p90
      %p92 = scmp.ne.s32.totalorder %s84, %s87
      %p93 = scmp.eq.s32.totalorder %s34, 0
      %p94 = por %p92, %p93
      %p95 = scmp.ne.s32.totalorder %s84, %s87
      %p96 = scmp.eq.s32.totalorder %s39, 2
      %p97 = por %p95, %p96
      %p98 = scmp.ne.s32.totalorder %s87, %s88
      %p99 = scmp.eq.s32.totalorder %s39, 0
      %p100 = por %p98, %p99
      %p101 = scmp.ne.s32.totalorder %s87, %s88
      %p102 = scmp.eq.s32.totalorder %s40, 2
      %p103 = por %p101, %p102
      %p105 = scmp.ne.s32.totalorder %s88, %s104
      %p106 = scmp.eq.s32.totalorder %s40, 0
      %p107 = por %p105, %p106
      %s108 = ssub.s32 %s41, %s53
      %p109 = scmp.eq.s32.totalorder %s108, 0
      %s111 = sadd.s32 %s110, 1
      %s112 = scalar_select %p109, %s110, %s111
      %p115 = pneg %p109
      %p116 = scmp.eq.s32.totalorder %s34, 2
      %p117 = por %p115, %p116
      %p118 = scmp.ne.s32.totalorder %s110, %s113
      %p119 = scmp.eq.s32.totalorder %s34, 0
      %p120 = por %p118, %p119
      %p121 = scmp.ne.s32.totalorder %s110, %s113
      %p122 = scmp.eq.s32.totalorder %s39, 2
      %p123 = por %p121, %p122
      %p124 = scmp.ne.s32.totalorder %s113, %s114
      %p125 = scmp.eq.s32.totalorder %s39, 0
      %p126 = por %p124, %p125
      %p127 = scmp.ne.s32.totalorder %s113, %s114
      %p128 = scmp.eq.s32.totalorder %s40, 2
      %p129 = por %p127, %p128
      %p131 = scmp.ne.s32.totalorder %s114, %s130
      %p132 = scmp.eq.s32.totalorder %s40, 0
      %p133 = por %p131, %p132
      %s135 = sadd.s32 %s134, 1
      %p138 = scmp.eq.s32.totalorder %s34, 2
      %p139 = scmp.ne.s32.totalorder %s134, %s136
      %p140 = scmp.eq.s32.totalorder %s34, 0
      %p141 = por %p139, %p140
      %p142 = scmp.ne.s32.totalorder %s134, %s136
      %p143 = scmp.eq.s32.totalorder %s39, 2
      %p144 = por %p142, %p143
      %p145 = scmp.ne.s32.totalorder %s136, %s137
      %p146 = scmp.eq.s32.totalorder %s39, 0
      %p147 = por %p145, %p146
      %p148 = scmp.ne.s32.totalorder %s136, %s137
      %p149 = scmp.eq.s32.totalorder %s40, 2
      %p150 = por %p148, %p149
      %p152 = scmp.ne.s32.totalorder %s137, %s151
      %p153 = scmp.eq.s32.totalorder %s40, 0
      %p154 = por %p152, %p153
      %s156 = sadd.s32 %s155, 1
      %p159 = scmp.eq.s32.totalorder %s34, 2
      %p160 = scmp.ne.s32.totalorder %s155, %s157
      %p161 = scmp.eq.s32.totalorder %s34, 0
      %p162 = por %p160, %p161
      %p163 = scmp.ne.s32.totalorder %s155, %s157
      %p164 = scmp.eq.s32.totalorder %s39, 2
      %p165 = por %p163, %p164
      %p166 = scmp.ne.s32.totalorder %s157, %s158
      %p167 = scmp.eq.s32.totalorder %s39, 0
      %p168 = por %p166, %p167
      %p169 = scmp.ne.s32.totalorder %s157, %s158
      %p170 = scmp.eq.s32.totalorder %s40, 2
      %p171 = por %p169, %p170
      %p173 = scmp.ne.s32.totalorder %s158, %s172
      %p174 = scmp.eq.s32.totalorder %s40, 0
      %p175 = por %p173, %p174
      %s177 = sadd.s32 %s176, 1
      %p180 = scmp.eq.s32.totalorder %s34, 2
      %p181 = scmp.ne.s32.totalorder %s176, %s178
      %p182 = scmp.eq.s32.totalorder %s34, 0
      %p183 = por %p181, %p182
      %p184 = scmp.ne.s32.totalorder %s176, %s178
      %p185 = scmp.eq.s32.totalorder %s39, 2
      %p186 = por %p184, %p185
      %p187 = scmp.ne.s32.totalorder %s178, %s179
      %p188 = scmp.eq.s32.totalorder %s39, 0
      %p189 = por %p187, %p188
      %p190 = scmp.ne.s32.totalorder %s178, %s179
      %p191 = scmp.eq.s32.totalorder %s40, 2
      %p192 = por %p190, %p191
      %p194 = scmp.ne.s32.totalorder %s179, %s193
      %p195 = scmp.eq.s32.totalorder %s40, 0
      %p196 = por %p194, %p195
      %s198 = sadd.s32 %s197, 1
      %p201 = scmp.eq.s32.totalorder %s34, 2
      %p202 = scmp.ne.s32.totalorder %s197, %s199
      %p203 = scmp.eq.s32.totalorder %s34, 0
      %p204 = por %p202, %p203
      %p205 = scmp.ne.s32.totalorder %s197, %s199
      %p206 = scmp.eq.s32.totalorder %s39, 2
      %p207 = por %p205, %p206
      %p208 = scmp.ne.s32.totalorder %s199, %s200
      %p209 = scmp.eq.s32.totalorder %s39, 0
      %p210 = por %p208, %p209
      %p211 = scmp.ne.s32.totalorder %s199, %s200
      %p212 = scmp.eq.s32.totalorder %s40, 2
      %p213 = por %p211, %p212
      %p215 = scmp.ne.s32.totalorder %s200, %s214
      %p216 = scmp.eq.s32.totalorder %s40, 0
      %p217 = por %p215, %p216
      %s219 = sadd.s32 %s218, 1
      %p222 = scmp.eq.s32.totalorder %s34, 2
      %p223 = scmp.ne.s32.totalorder %s218, %s220
      %p224 = scmp.eq.s32.totalorder %s34, 0
      %p225 = por %p223, %p224
      %p226 = scmp.ne.s32.totalorder %s218, %s220
      %p227 = scmp.eq.s32.totalorder %s39, 2
      %p228 = por %p226, %p227
      %p229 = scmp.ne.s32.totalorder %s220, %s221
      %p230 = scmp.eq.s32.totalorder %s39, 0
      %p231 = por %p229, %p230
      %p232 = scmp.ne.s32.totalorder %s220, %s221
      %p233 = scmp.eq.s32.totalorder %s40, 2
      %p234 = por %p232, %p233
      %p236 = scmp.ne.s32.totalorder %s221, %s235
      %p237 = scmp.eq.s32.totalorder %s40, 0
      %p238 = por %p236, %p237
      %s240 = sadd.s32 %s239, 1
      %p243 = scmp.eq.s32.totalorder %s34, 2
      %p244 = scmp.ne.s32.totalorder %s239, %s241
      %p245 = scmp.eq.s32.totalorder %s34, 0
      %p246 = por %p244, %p245
      %p247 = scmp.ne.s32.totalorder %s239, %s241
      %p248 = scmp.eq.s32.totalorder %s39, 2
      %p249 = por %p247, %p248
      %p250 = scmp.ne.s32.totalorder %s241, %s242
      %p251 = scmp.eq.s32.totalorder %s39, 0
      %p252 = por %p250, %p251
      %p253 = scmp.ne.s32.totalorder %s241, %s242
      %p254 = scmp.eq.s32.totalorder %s40, 2
      %p255 = por %p253, %p254
      %p257 = scmp.ne.s32.totalorder %s242, %s256
      %p258 = scmp.eq.s32.totalorder %s40, 0
      %p259 = por %p257, %p258
      %s261 = sadd.s32 %s260, 1
      %p264 = scmp.eq.s32.totalorder %s34, 2
      %p265 = scmp.ne.s32.totalorder %s260, %s262
      %p266 = scmp.eq.s32.totalorder %s34, 0
      %p267 = por %p265, %p266
      %p268 = scmp.ne.s32.totalorder %s260, %s262
      %p269 = scmp.eq.s32.totalorder %s39, 2
      %p270 = por %p268, %p269
      %p271 = scmp.ne.s32.totalorder %s262, %s263
      %p272 = scmp.eq.s32.totalorder %s39, 0
      %p273 = por %p271, %p272
      %p274 = scmp.ne.s32.totalorder %s262, %s263
      %p275 = scmp.eq.s32.totalorder %s40, 2
      %p276 = por %p274, %p275
      %p278 = scmp.ne.s32.totalorder %s263, %s277
      %p279 = scmp.eq.s32.totalorder %s40, 0
      %p280 = por %p278, %p279
      %s282 = sadd.s32 %s281, 1
      %p285 = scmp.eq.s32.totalorder %s34, 2
      %p286 = scmp.ne.s32.totalorder %s281, %s283
      %p287 = scmp.eq.s32.totalorder %s34, 0
      %p288 = por %p286, %p287
      %p289 = scmp.ne.s32.totalorder %s281, %s283
      %p290 = scmp.eq.s32.totalorder %s39, 2
      %p291 = por %p289, %p290
      %p292 = scmp.ne.s32.totalorder %s283, %s284
      %p293 = scmp.eq.s32.totalorder %s39, 0
      %p294 = por %p292, %p293
      %p295 = scmp.ne.s32.totalorder %s283, %s284
      %p296 = scmp.eq.s32.totalorder %s40, 2
      %p297 = por %p295, %p296
      %p299 = scmp.ne.s32.totalorder %s284, %s298
      %p300 = scmp.eq.s32.totalorder %s40, 0
      %p301 = por %p299, %p300
      %s302 = ssub.s32 %s41, %s53
      %s303 = ssub.s32 %s42, %s49
      %s304 = sor.u32 %s302, %s303
      %p305 = scmp.eq.s32.totalorder %s304, 0
      %s307 = sadd.s32 %s306, 1
      %s308 = scalar_select %p305, %s306, %s307
      %p311 = pneg %p305
      %p312 = scmp.eq.s32.totalorder %s34, 2
      %p313 = por %p311, %p312
      %p314 = scmp.ne.s32.totalorder %s306, %s309
      %p315 = scmp.eq.s32.totalorder %s34, 0
      %p316 = por %p314, %p315
      %p317 = scmp.ne.s32.totalorder %s306, %s309
      %p318 = scmp.eq.s32.totalorder %s39, 2
      %p319 = por %p317, %p318
      %p320 = scmp.ne.s32.totalorder %s309, %s310
      %p321 = scmp.eq.s32.totalorder %s39, 0
      %p322 = por %p320, %p321
      %p323 = scmp.ne.s32.totalorder %s309, %s310
      %p324 = scmp.eq.s32.totalorder %s40, 2
      %p325 = por %p323, %p324
      %p327 = scmp.ne.s32.totalorder %s310, %s326
      %p328 = scmp.eq.s32.totalorder %s40, 0
      %p329 = por %p327, %p328
      %s330 = ssub.s32 %s41, %s53
      %s331 = ssub.s32 %s42, %s49
      %s332 = sor.u32 %s330, %s331
      %p333 = scmp.eq.s32.totalorder %s332, 0
      %s335 = sadd.s32 %s334, 1
      %s336 = scalar_select %p333, %s334, %s335
      %p339 = pneg %p333
      %p340 = scmp.eq.s32.totalorder %s34, 2
      %p341 = por %p339, %p340
      %p342 = scmp.ne.s32.totalorder %s334, %s337
      %p343 = scmp.eq.s32.totalorder %s34, 0
      %p344 = por %p342, %p343
      %p345 = scmp.ne.s32.totalorder %s334, %s337
      %p346 = scmp.eq.s32.totalorder %s39, 2
      %p347 = por %p345, %p346
      %p348 = scmp.ne.s32.totalorder %s337, %s338
      %p349 = scmp.eq.s32.totalorder %s39, 0
      %p350 = por %p348, %p349
      %p351 = scmp.ne.s32.totalorder %s337, %s338
      %p352 = scmp.eq.s32.totalorder %s40, 2
      %p353 = por %p351, %p352
      %p355 = scmp.ne.s32.totalorder %s338, %s354
      %p356 = scmp.eq.s32.totalorder %s40, 0
      %p357 = por %p355, %p356
      %p358 = scmp.le.s32.totalorder 1, %s34
      %p359 = scmp.lt.s32.totalorder %s34, 4
      %p360 = pnand %p358, %p359
      %p361 = pneg %p360
      // Predicated region
      $region9: #{tpu_custom_call.1} parent=5 // pred_check
        _
      $region10: #{tpu_custom_call.1} parent=5 // pred_check_branch
        %363 = sbr.rel (%p360) target = $region12
      $region11: #{tpu_custom_call.1} parent=5 // pred_region
        %s364 = ssub.s32 %s34, 1
        // Predicated region
        $region13: #{tpu_custom_call.1} parent=11 // pred_check
          %p365 = pneg %p147
        $region14: #{tpu_custom_call.1} parent=11 // pred_check_branch
          %367 = sbr.rel (%p365) target = $region16
        $region15: #{tpu_custom_call.1} parent=11 // pred_region
          %s369 = ssub.s32 256, 256
          %370 = vsyncadd [#allocation11], %s369
          %s371 = sshll.u32 [#allocation10], 4
          %s372 = int_to_ptr.vmem [resolvable:$true] %s371
          %377 = dma.hbm_to_vmem [thread:$0]  %s3, 256, %s372, [#allocation11], 64, 64, 4
        $region16: #{tpu_custom_call.1} parent=11 // pred_fallthru
          _
        // Predicated region
        $region17: #{tpu_custom_call.1} parent=11 // pred_check
          %p378 = pneg %p168
        $region18: #{tpu_custom_call.1} parent=11 // pred_check_branch
          %380 = sbr.rel (%p378) target = $region20
        $region19: #{tpu_custom_call.1} parent=11 // pred_region
          %s382 = ssub.s32 16, 16
          %383 = vsyncadd [#allocation11], %s382
          %s385 = sshll.u32 [#allocation12], 4
          %s386 = int_to_ptr.vmem [resolvable:$true] %s385
          %388 = dma.hbm_to_vmem [thread:$0]  %s4, 16, %s386, [#allocation11]
        $region20: #{tpu_custom_call.1} parent=11 // pred_fallthru
          _
        // Predicated region
        $region21: #{tpu_custom_call.1} parent=11 // pred_check
          %p389 = pneg %p189
        $region22: #{tpu_custom_call.1} parent=11 // pred_check_branch
          %391 = sbr.rel (%p389) target = $region24
        $region23: #{tpu_custom_call.1} parent=11 // pred_region
          %s393 = ssub.s32 256, 256
          %394 = vsyncadd [#allocation14], %s393
          %s395 = sshll.u32 [#allocation13], 4
          %s396 = int_to_ptr.vmem [resolvable:$true] %s395
          %401 = dma.hbm_to_vmem [thread:$0]  %s5, 256, %s396, [#allocation14], 64, 64, 4
        $region24: #{tpu_custom_call.1} parent=11 // pred_fallthru
          _
        // Predicated region
        $region25: #{tpu_custom_call.1} parent=11 // pred_check
          %p402 = pneg %p210
        $region26: #{tpu_custom_call.1} parent=11 // pred_check_branch
          %404 = sbr.rel (%p402) target = $region28
        $region27: #{tpu_custom_call.1} parent=11 // pred_region
          %s406 = ssub.s32 16, 16
          %407 = vsyncadd [#allocation14], %s406
          %s409 = sshll.u32 [#allocation15], 4
          %s410 = int_to_ptr.vmem [resolvable:$true] %s409
          %412 = dma.hbm_to_vmem [thread:$0]  %s6, 16, %s410, [#allocation14]
        $region28: #{tpu_custom_call.1} parent=11 // pred_fallthru
          _
        // Predicated region
        $region29: #{tpu_custom_call.1} parent=11 // pred_check
          %p413 = pneg %p231
        $region30: #{tpu_custom_call.1} parent=11 // pred_check_branch
          %415 = sbr.rel (%p413) target = $region32
        $region31: #{tpu_custom_call.1} parent=11 // pred_region
          %s417 = ssub.s32 256, 256
          %418 = vsyncadd [#allocation17], %s417
          %s419 = sshll.u32 [#allocation16], 4
          %s420 = int_to_ptr.vmem [resolvable:$true] %s419
          %425 = dma.hbm_to_vmem [thread:$0]  %s7, 256, %s420, [#allocation17], 64, 64, 4
        $region32: #{tpu_custom_call.1} parent=11 // pred_fallthru
          _
        // Predicated region
        $region33: #{tpu_custom_call.1} parent=11 // pred_check
          %p426 = pneg %p252
        $region34: #{tpu_custom_call.1} parent=11 // pred_check_branch
          %428 = sbr.rel (%p426) target = $region36
        $region35: #{tpu_custom_call.1} parent=11 // pred_region
          %s430 = ssub.s32 16, 16
          %431 = vsyncadd [#allocation17], %s430
          %s433 = sshll.u32 [#allocation18], 4
          %s434 = int_to_ptr.vmem [resolvable:$true] %s433
          %436 = dma.hbm_to_vmem [thread:$0]  %s8, 16, %s434, [#allocation17]
        $region36: #{tpu_custom_call.1} parent=11 // pred_fallthru
          _
        // Predicated region
        $region37: #{tpu_custom_call.1} parent=11 // pred_check
          %p437 = pneg %p273
        $region38: #{tpu_custom_call.1} parent=11 // pred_check_branch
          %439 = sbr.rel (%p437) target = $region40
        $region39: #{tpu_custom_call.1} parent=11 // pred_region
          _
        $region40: #{tpu_custom_call.1} parent=11 // pred_fallthru
          _
        // Predicated region
        $region41: #{tpu_custom_call.1} parent=11 // pred_check
          %p440 = pneg %p294
        $region42: #{tpu_custom_call.1} parent=11 // pred_check_branch
          %442 = sbr.rel (%p440) target = $region44
        $region43: #{tpu_custom_call.1} parent=11 // pred_region
          _
        $region44: #{tpu_custom_call.1} parent=11 // pred_fallthru
          _
      $region12: #{tpu_custom_call.1} parent=5 // pred_fallthru
        _
      %p443 = scmp.lt.s32.totalorder %s34, 3
      // Predicated region
      $region45: #{tpu_custom_call.1} parent=5 // pred_check
        %p444 = pneg %p443
      $region46: #{tpu_custom_call.1} parent=5 // pred_check_branch
        %446 = sbr.rel (%p444) target = $region48
      $region47: #{tpu_custom_call.1} parent=5 // pred_region
        // Predicated region
        $region49: #{tpu_custom_call.1} parent=47 // pred_check
          %p447 = pneg %p68
        $region50: #{tpu_custom_call.1} parent=47 // pred_check_branch
          %449 = sbr.rel (%p447) target = $region52
        $region51: #{tpu_custom_call.1} parent=47 // pred_region
          %s450 = sand.u32 %s58, 1
          %s451 = scalar_lea.sflag [#allocation5], %s450
          %s452 = sand.u32 %s58, 1
          %s453 = smul.addr %s452, 8
          %s454 = scalar_lea.vmem [#allocation4], %s453
          %s455 = smul.u32 2, %s41
          %s456 = ssub.s32 5, %s455
          %p457 = scmp.lt.s32.totalorder %s456, 2
          %s458 = scalar_select %p457, %s456, 2
          %s459 = smul.u32 64, %s458
          %s461 = ssub.s32 128, %s459
          %462 = vsyncadd %s451, %s461
          %p463 = scmp.ne.s32.totalorder 0, %s459
          %s464 = sadd.s32 %s42, %s455
          %s465 = smul.addr %s464, 64
          %s466 = scalar_lea.hbm %s0, %s465
          %s467 = smul.u32 4, %s458
          %s468 = sshll.u32 %s454, 4
          %s469 = int_to_ptr.vmem [resolvable:$true] %s468
          %s470 = sshll.u32 %s467, 4
          %474 = dma.hbm_to_vmem [thread:$0]  (%p463), %s466, %s470, %s469, %s451, 64, 64, 4
        $region52: #{tpu_custom_call.1} parent=47 // pred_fallthru
          _
        // Predicated region
        $region53: #{tpu_custom_call.1} parent=47 // pred_check
          %p475 = pneg %p94
        $region54: #{tpu_custom_call.1} parent=47 // pred_check_branch
          %477 = sbr.rel (%p475) target = $region56
        $region55: #{tpu_custom_call.1} parent=47 // pred_region
          %s478 = sand.u32 %s34, 1
          %s479 = scalar_lea.sflag [#allocation8], %s478
          %s480 = sand.u32 %s84, 1
          %s481 = smul.addr %s480, 16
          %s482 = scalar_lea.vmem [#allocation7], %s481
          %s483 = smul.u32 2, %s41
          %s484 = ssub.s32 5, %s483
          %p485 = scmp.lt.s32.totalorder %s484, 2
          %s486 = scalar_select %p485, %s484, 2
          %s487 = smul.u32 64, %s486
          %s488 = smul.u32 %s487, 2
          %s490 = ssub.s32 256, %s488
          %491 = vsyncadd %s479, %s490
          %p492 = scmp.ne.s32.totalorder 0, %s488
          %s493 = smul.addr %s483, 2
          %s494 = smul.addr %s493, 64
          %s495 = scalar_lea.hbm %s1, %s494
          %s496 = smul.u32 %s486, 2
          %s497 = smul.u32 4, %s496
          %s498 = sshll.u32 %s482, 4
          %s499 = int_to_ptr.vmem [resolvable:$true] %s498
          %s500 = sshll.u32 %s497, 4
          %504 = dma.hbm_to_vmem [thread:$0]  (%p492), %s495, %s500, %s499, %s479, 64, 64, 4
        $region56: #{tpu_custom_call.1} parent=47 // pred_fallthru
          _
        // Predicated region
        $region57: #{tpu_custom_call.1} parent=47 // pred_check
          %p505 = pneg %p120
        $region58: #{tpu_custom_call.1} parent=47 // pred_check_branch
          %507 = sbr.rel (%p505) target = $region60
        $region59: #{tpu_custom_call.1} parent=47 // pred_region
          %s508 = sand.u32 %s34, 1
          %s509 = scalar_lea.sflag [#allocation8], %s508
          %s510 = sand.u32 %s110, 1
          %s511 = smul.addr %s510, 16
          %s512 = scalar_lea.vmem [#allocation9], %s511
          %s513 = smul.u32 2, %s41
          %s514 = ssub.s32 5, %s513
          %p515 = scmp.lt.s32.totalorder %s514, 2
          %s516 = scalar_select %p515, %s514, 2
          %s517 = smul.u32 64, %s516
          %s518 = smul.u32 %s517, 2
          %s520 = ssub.s32 256, %s518
          %521 = vsyncadd %s509, %s520
          %p522 = scmp.ne.s32.totalorder 0, %s518
          %s523 = smul.addr %s513, 2
          %s524 = smul.addr %s523, 64
          %s525 = scalar_lea.hbm %s2, %s524
          %s526 = smul.u32 %s516, 2
          %s527 = smul.u32 4, %s526
          %s528 = sshll.u32 %s512, 4
          %s529 = int_to_ptr.vmem [resolvable:$true] %s528
          %s530 = sshll.u32 %s527, 4
          %534 = dma.hbm_to_vmem [thread:$0]  (%p522), %s525, %s530, %s529, %s509, 64, 64, 4
        $region60: #{tpu_custom_call.1} parent=47 // pred_fallthru
          _
      $region48: #{tpu_custom_call.1} parent=5 // pred_fallthru
        _
      %p535 = scmp.le.s32.totalorder 1, %s34
      %p536 = scmp.lt.s32.totalorder %s34, 4
      %p537 = pnand %p535, %p536
      %p538 = pneg %p537
      // Predicated region
      $region61: #{tpu_custom_call.1} parent=5 // pred_check
        _
      $region62: #{tpu_custom_call.1} parent=5 // pred_check_branch
        %540 = sbr.rel (%p537) target = $region64
      $region63: #{tpu_custom_call.1} parent=5 // pred_region
        %s541 = ssub.s32 %s34, 1
        %s542 = sand.u32 %s61, 1
        %s543 = scalar_lea.sflag [#allocation5], %s542
        %s544 = sand.u32 %s61, 1
        %s545 = smul.addr %s544, 8
        %s546 = scalar_lea.vmem [#allocation4], %s545
        // Predicated region
        $region65: #{tpu_custom_call.1} parent=63 // pred_check
          %p547 = pneg %p74
        $region66: #{tpu_custom_call.1} parent=63 // pred_check_branch
          %549 = sbr.rel (%p547) target = $region68
        $region67: #{tpu_custom_call.1} parent=63 // pred_region
          %550 = dma.done %s543, 128
        $region68: #{tpu_custom_call.1} parent=63 // pred_fallthru
          _
        %s551 = sand.u32 %s39, 1
        %s552 = scalar_lea.sflag [#allocation8], %s551
        %s553 = sand.u32 %s87, 1
        %s554 = smul.addr %s553, 16
        %s555 = scalar_lea.vmem [#allocation7], %s554
        // Predicated region
        $region69: #{tpu_custom_call.1} parent=63 // pred_check
          %p556 = pneg %p100
        $region70: #{tpu_custom_call.1} parent=63 // pred_check_branch
          %558 = sbr.rel (%p556) target = $region72
        $region71: #{tpu_custom_call.1} parent=63 // pred_region
          %559 = dma.done %s552, 256
        $region72: #{tpu_custom_call.1} parent=63 // pred_fallthru
          _
        %s560 = sand.u32 %s39, 1
        %s561 = scalar_lea.sflag [#allocation8], %s560
        %s562 = sand.u32 %s113, 1
        %s563 = smul.addr %s562, 16
        %s564 = scalar_lea.vmem [#allocation9], %s563
        // Predicated region
        $region73: #{tpu_custom_call.1} parent=63 // pred_check
          %p565 = pneg %p126
        $region74: #{tpu_custom_call.1} parent=63 // pred_check_branch
          %567 = sbr.rel (%p565) target = $region76
        $region75: #{tpu_custom_call.1} parent=63 // pred_region
          %568 = dma.done %s561, 256
        $region76: #{tpu_custom_call.1} parent=63 // pred_fallthru
          _
        // Predicated region
        $region77: #{tpu_custom_call.1} parent=63 // pred_check
          %p569 = pneg %p147
        $region78: #{tpu_custom_call.1} parent=63 // pred_check_branch
          %571 = sbr.rel (%p569) target = $region80
        $region79: #{tpu_custom_call.1} parent=63 // pred_region
          %572 = dma.done [#allocation11], 256
        $region80: #{tpu_custom_call.1} parent=63 // pred_fallthru
          _
        // Predicated region
        $region81: #{tpu_custom_call.1} parent=63 // pred_check
          %p573 = pneg %p168
        $region82: #{tpu_custom_call.1} parent=63 // pred_check_branch
          %575 = sbr.rel (%p573) target = $region84
        $region83: #{tpu_custom_call.1} parent=63 // pred_region
          %576 = dma.done [#allocation11], 16
        $region84: #{tpu_custom_call.1} parent=63 // pred_fallthru
          _
        // Predicated region
        $region85: #{tpu_custom_call.1} parent=63 // pred_check
          %p577 = pneg %p189
        $region86: #{tpu_custom_call.1} parent=63 // pred_check_branch
          %579 = sbr.rel (%p577) target = $region88
        $region87: #{tpu_custom_call.1} parent=63 // pred_region
          %580 = dma.done [#allocation14], 256
        $region88: #{tpu_custom_call.1} parent=63 // pred_fallthru
          _
        // Predicated region
        $region89: #{tpu_custom_call.1} parent=63 // pred_check
          %p581 = pneg %p210
        $region90: #{tpu_custom_call.1} parent=63 // pred_check_branch
          %583 = sbr.rel (%p581) target = $region92
        $region91: #{tpu_custom_call.1} parent=63 // pred_region
          %584 = dma.done [#allocation14], 16
        $region92: #{tpu_custom_call.1} parent=63 // pred_fallthru
          _
        // Predicated region
        $region93: #{tpu_custom_call.1} parent=63 // pred_check
          %p585 = pneg %p231
        $region94: #{tpu_custom_call.1} parent=63 // pred_check_branch
          %587 = sbr.rel (%p585) target = $region96
        $region95: #{tpu_custom_call.1} parent=63 // pred_region
          %588 = dma.done [#allocation17], 256
        $region96: #{tpu_custom_call.1} parent=63 // pred_fallthru
          _
        // Predicated region
        $region97: #{tpu_custom_call.1} parent=63 // pred_check
          %p589 = pneg %p252
        $region98: #{tpu_custom_call.1} parent=63 // pred_check_branch
          %591 = sbr.rel (%p589) target = $region100
        $region99: #{tpu_custom_call.1} parent=63 // pred_region
          %592 = dma.done [#allocation17], 16
        $region100: #{tpu_custom_call.1} parent=63 // pred_fallthru
          _
        %s593 = sand.u32 %s61, 1
        %s594 = scalar_lea.sflag [#allocation5], %s593
        %s595 = sand.u32 %s61, 1
        %s596 = smul.addr %s595, 8
        %s597 = scalar_lea.vmem [#allocation4], %s596
        %p598 = pneg %p74
        %p599 = pneg %p71
        %s600 = sand.u32 %s39, 1
        %s601 = scalar_lea.sflag [#allocation8], %s600
        %s602 = sand.u32 %s87, 1
        %s603 = smul.addr %s602, 16
        %s604 = scalar_lea.vmem [#allocation7], %s603
        %p605 = pneg %p100
        %p606 = pneg %p97
        %s607 = sand.u32 %s39, 1
        %s608 = scalar_lea.sflag [#allocation8], %s607
        %s609 = sand.u32 %s113, 1
        %s610 = smul.addr %s609, 16
        %s611 = scalar_lea.vmem [#allocation9], %s610
        %p612 = pneg %p126
        %p613 = pneg %p123
        %p614 = pneg %p147
        %p615 = pneg %p144
        %p616 = pneg %p168
        %p617 = pneg %p165
        %p618 = pneg %p189
        %p619 = pneg %p186
        %p620 = pneg %p210
        %p621 = pneg %p207
        %p622 = pneg %p231
        %p623 = pneg %p228
        %p624 = pneg %p252
        %p625 = pneg %p249
        %p626 = pneg %p273
        %p627 = pneg %p270
        %p628 = pneg %p294
        %p629 = pneg %p291
        %p630 = pneg %p322
        %p631 = pneg %p319
        %s632 = sand.u32 %s309, 1
        %s633 = scalar_lea.sflag [#allocation6], %s632
        %s634 = sand.u32 %s309, 1
        %s635 = smul.addr %s634, 16
        %s636 = scalar_lea.vmem [#allocation19], %s635
        %p637 = pneg %p350
        %p638 = pneg %p347
        %s639 = sand.u32 %s337, 1
        %s640 = scalar_lea.sflag [#allocation21], %s639
        %s641 = sand.u32 %s337, 1
        %s642 = smul.addr %s641, 64
        %s643 = scalar_lea.vmem [#allocation20], %s642
        %s644 = smul.u32 2, %s43
        %s645 = ssub.s32 5, %s644
        %p646 = scmp.lt.s32.totalorder %s645, 2
        %s647 = scalar_select %p646, %s645, 2
        %s648 = smul.u32 64, %s647
        %s649 = smul.u32 2, %s43
        %s650 = ssub.s32 5, %s649
        %p651 = scmp.lt.s32.totalorder %s650, 2
        %s652 = scalar_select %p651, %s650, 2
        %s653 = smul.u32 64, %s652
        %s654 = smul.u32 %s653, 2
        %s655 = smul.u32 2, %s43
        %s656 = ssub.s32 5, %s655
        %p657 = scmp.lt.s32.totalorder %s656, 2
        %s658 = scalar_select %p657, %s656, 2
        %s659 = smul.u32 64, %s658
        %s660 = smul.u32 %s659, 2
        %s661 = smul.u32 2, %s43
        %s662 = ssub.s32 5, %s661
        %p663 = scmp.lt.s32.totalorder %s662, 2
        %s664 = scalar_select %p663, %s662, 2
        %s665 = smul.u32 128, %s664
        %s666 = smul.u32 2, %s43
        %s667 = ssub.s32 5, %s666
        %p668 = scmp.lt.s32.totalorder %s667, 2
        %s669 = scalar_select %p668, %s667, 2
        %s670 = smul.u32 128, %s669
        %s671 = smul.u32 %s670, 4
        %p673 = scmp.eq.s32.totalorder %s44, 0
        // Predicated region
        $region101: #{tpu_custom_call.1} parent=63 // pred_check
          %p674 = pneg %p673
        $region102: #{tpu_custom_call.1} parent=63 // pred_check_branch
          %676 = sbr.rel (%p674) target = $region104
        $region103: #{tpu_custom_call.1} parent=63 // pred_region
          %v677 = vld [vmem:[%s555] sm:$0xf]
          %v678 = vld [vmem:[%s555 + $0x4] sm:$0xf]
          %v679 = vld [vmem:[%s555 + $0x8] sm:$0xf]
          %v680 = vld [vmem:[%s555 + $0xc] sm:$0xf]
          %v681 = vld [vmem:[%s564] sm:$0xf]
          %v682 = vld [vmem:[%s564 + $0x4] sm:$0xf]
          %v683 = vld [vmem:[%s564 + $0x8] sm:$0xf]
          %v684 = vld [vmem:[%s564 + $0xc] sm:$0xf]
          %v685 = vld [vmem:[#allocation13] sm:$0xf]
          %v686 = vld [vmem:[#allocation13 + $0x4] sm:$0xf]
          %v687 = vld [vmem:[#allocation13 + $0x8] sm:$0xf]
          %v688 = vld [vmem:[#allocation13 + $0xc] sm:$0xf]
          %v689 = vld [vmem:[#allocation15] sm:$0x1]
          %v691 = vlaneseq
          %v692 = vshrl.u32 %v691, 7
          %v693 = vsub.s32 0, %v692
          %v694 = vrot.slane %v689, %v693
          %v700 = vunpack.c.l.b16 %v677
          %v701 = vunpack.c.l.b16 %v678
          %v702 = vunpack.c.l.b16 %v679
          %v703 = vunpack.c.l.b16 %v680
          %v704 = vpack.c.b16 %v701, %v700
          %v705 = vpack.c.b16 %v703, %v702
          %v710 = vunpack.c.l.b16 %v685
          %v711 = vunpack.c.l.b16 %v686
          %v712 = vunpack.c.l.b16 %v687
          %v713 = vunpack.c.l.b16 %v688
          %v714 = vpack.c.b16 %v711, %v710
          %v715 = vpack.c.b16 %v713, %v712
          %vm718 = vcmask 261120
          %v720 = vsel %vm718, %v704, 0
          %v723 = vsel %vm718, %v705, 0
          %725 = vmatprep.subr.bf16.mxu0 0
          %726 = vmatpush1.bf16.msra.mxu0 0
          %727 = vmatprep.subr.bf16.mxu0 0
          %728 = vmatpush1.bf16.msra.mxu0 0
          %729 = vmatprep.subr.bf16.mxu0 0
          %730 = vmatpush1.bf16.msra.mxu0 0
          %731 = vmatprep.subr.bf16.mxu0 0
          %732 = vmatpush1.bf16.msra.mxu0 0
          %733 = vmatprep.subr.bf16.mxu0 0
          %734 = vmatpush1.bf16.msra.mxu0 0
          %735 = vmatprep.subr.bf16.mxu0 0
          %736 = vmatpush1.bf16.msra.mxu0 0
          %737 = vmatprep.subr.bf16.mxu0 0
          %738 = vmatpush1.bf16.msra.mxu0 %v715
          %739 = vmatprep.subr.bf16.mxu0 0
          %740 = vmatpush1.bf16.msra.mxu0 %v714
          %741 = vmatprep.subr.bf16.mxu0 0
          %742 = vmatpush2.bf16.msra.mxu0 0
          %743 = vmatprep.subr.bf16.mxu0 0
          %744 = vmatpush2.bf16.msra.mxu0 0
          %745 = vmatprep.subr.bf16.mxu0 0
          %746 = vmatpush2.bf16.msra.mxu0 0
          %747 = vmatprep.subr.bf16.mxu0 0
          %748 = vmatpush2.bf16.msra.mxu0 0
          %749 = vmatprep.subr.bf16.mxu0 0
          %750 = vmatpush2.bf16.msra.mxu0 0
          %751 = vmatprep.subr.bf16.mxu0 0
          %752 = vmatpush2.bf16.msra.mxu0 0
          %753 = vmatprep.subr.bf16.mxu0 0
          %754 = vmatpush2.bf16.msra.mxu0 0
          %755 = vmatprep.subr.bf16.mxu0 0
          %756 = vmatpush2.bf16.msra.mxu0 0
          %757 = vmatprep.mubr.bf16.mxu0 0
          %758 = vmatmul.mubr.bf16.gmra.mxu0 %v720
          %v759 = vpop.f32.mrf.mxu0
          %v760 = vadd.f32 %v694, %v759
          %v761 = vpop.f32.mrf.mxu0
          %v762 = vpop.f32.mrf.mxu0
          %v763 = vadd.f32 %v694, %v762
          %v764 = vpop.f32.mrf.mxu0
          %765 = vmatprep.mubr.bf16.mxu0 0
          %766 = vmatmul.mubr.bf16.gmra.mxu0 %v723
          %v767 = vpop.f32.mrf.mxu0
          %v768 = vadd.f32 %v694, %v767
          %v769 = vpop.f32.mrf.mxu0
          %v770 = vpop.f32.mrf.mxu0
          %v771 = vadd.f32 %v694, %v770
          %v772 = vpop.f32.mrf.mxu0
          %773 = vdwg.mxu0
          %v774 = vld [vmem:[#allocation16] sm:$0xf]
          %v775 = vld [vmem:[#allocation16 + $0x4] sm:$0xf]
          %v776 = vld [vmem:[#allocation16 + $0x8] sm:$0xf]
          %v777 = vld [vmem:[#allocation16 + $0xc] sm:$0xf]
          %v778 = vld [vmem:[#allocation18] sm:$0x1]
          %v780 = vlaneseq
          %v781 = vshrl.u32 %v780, 7
          %v782 = vsub.s32 0, %v781
          %v783 = vrot.slane %v778, %v782
          %v789 = vunpack.c.l.b16 %v681
          %v790 = vunpack.c.l.b16 %v682
          %v791 = vunpack.c.l.b16 %v683
          %v792 = vunpack.c.l.b16 %v684
          %v793 = vpack.c.b16 %v790, %v789
          %v794 = vpack.c.b16 %v792, %v791
          %v799 = vunpack.c.l.b16 %v774
          %v800 = vunpack.c.l.b16 %v775
          %v801 = vunpack.c.l.b16 %v776
          %v802 = vunpack.c.l.b16 %v777
          %v803 = vpack.c.b16 %v800, %v799
          %v804 = vpack.c.b16 %v802, %v801
          %v808 = vsel %vm718, %v793, 0
          %v811 = vsel %vm718, %v794, 0
          %813 = vmatprep.subr.bf16.mxu0 0
          %814 = vmatpush1.bf16.msra.mxu0 0
          %815 = vmatprep.subr.bf16.mxu0 0
          %816 = vmatpush1.bf16.msra.mxu0 0
          %817 = vmatprep.subr.bf16.mxu0 0
          %818 = vmatpush1.bf16.msra.mxu0 0
          %819 = vmatprep.subr.bf16.mxu0 0
          %820 = vmatpush1.bf16.msra.mxu0 0
          %821 = vmatprep.subr.bf16.mxu0 0
          %822 = vmatpush1.bf16.msra.mxu0 0
          %823 = vmatprep.subr.bf16.mxu0 0
          %824 = vmatpush1.bf16.msra.mxu0 0
          %825 = vmatprep.subr.bf16.mxu0 0
          %826 = vmatpush1.bf16.msra.mxu0 %v804
          %827 = vmatprep.subr.bf16.mxu0 0
          %828 = vmatpush1.bf16.msra.mxu0 %v803
          %829 = vmatprep.subr.bf16.mxu0 0
          %830 = vmatpush2.bf16.msra.mxu0 0
          %831 = vmatprep.subr.bf16.mxu0 0
          %832 = vmatpush2.bf16.msra.mxu0 0
          %833 = vmatprep.subr.bf16.mxu0 0
          %834 = vmatpush2.bf16.msra.mxu0 0
          %835 = vmatprep.subr.bf16.mxu0 0
          %836 = vmatpush2.bf16.msra.mxu0 0
          %837 = vmatprep.subr.bf16.mxu0 0
          %838 = vmatpush2.bf16.msra.mxu0 0
          %839 = vmatprep.subr.bf16.mxu0 0
          %840 = vmatpush2.bf16.msra.mxu0 0
          %841 = vmatprep.subr.bf16.mxu0 0
          %842 = vmatpush2.bf16.msra.mxu0 0
          %843 = vmatprep.subr.bf16.mxu0 0
          %844 = vmatpush2.bf16.msra.mxu0 0
          %845 = vmatprep.mubr.bf16.mxu0 0
          %846 = vmatmul.mubr.bf16.gmra.mxu0 %v808
          %v847 = vpop.f32.mrf.mxu0
          %v848 = vadd.f32 %v783, %v847
          %v849 = vpop.f32.mrf.mxu0
          %v850 = vpop.f32.mrf.mxu0
          %v851 = vadd.f32 %v783, %v850
          %v852 = vpop.f32.mrf.mxu0
          %853 = vmatprep.mubr.bf16.mxu0 0
          %854 = vmatmul.mubr.bf16.gmra.mxu0 %v811
          %v855 = vpop.f32.mrf.mxu0
          %v856 = vadd.f32 %v783, %v855
          %v857 = vpop.f32.mrf.mxu0
          %v858 = vpop.f32.mrf.mxu0
          %v859 = vadd.f32 %v783, %v858
          %v860 = vpop.f32.mrf.mxu0
          %861 = vdwg.mxu0
          %v862 = vpack.c.bf16 %v763, %v760
          %v863 = vpack.c.bf16 %v771, %v768
          %v866 = vunpack.c.l.b16 %v862
          %v867 = vunpack.c.h.b16 %v862
          %v868 = vunpack.c.l.b16 %v863
          %v869 = vunpack.c.h.b16 %v863
          %v870 = vpack.c.b16 %v866, %v866
          %v871 = vpack.c.b16 %v867, %v867
          %v872 = vpack.c.b16 %v868, %v868
          %v873 = vpack.c.b16 %v869, %v869
          %vm878 = vcmask 257024
          %879 = vst.msk [vmem:[#allocation2] sm:$0xf] %vm878, %v870
          %880 = vst.msk [vmem:[#allocation2 + $0x4] sm:$0xf] %vm878, %v871
          %881 = vst.msk [vmem:[#allocation2 + $0x8] sm:$0xf] %vm878, %v872
          %882 = vst.msk [vmem:[#allocation2 + $0xc] sm:$0xf] %vm878, %v873
          %v883 = vpack.c.bf16 %v851, %v848
          %v884 = vpack.c.bf16 %v859, %v856
          %v887 = vunpack.c.l.b16 %v883
          %v888 = vunpack.c.h.b16 %v883
          %v889 = vunpack.c.l.b16 %v884
          %v890 = vunpack.c.h.b16 %v884
          %v891 = vpack.c.b16 %v887, %v887
          %v892 = vpack.c.b16 %v888, %v888
          %v893 = vpack.c.b16 %v889, %v889
          %v894 = vpack.c.b16 %v890, %v890
          %899 = vst.msk [vmem:[#allocation3] sm:$0xf] %vm878, %v891
          %900 = vst.msk [vmem:[#allocation3 + $0x4] sm:$0xf] %vm878, %v892
          %901 = vst.msk [vmem:[#allocation3 + $0x8] sm:$0xf] %vm878, %v893
          %902 = vst.msk [vmem:[#allocation3 + $0xc] sm:$0xf] %vm878, %v894
        $region104: #{tpu_custom_call.1} parent=63 // pred_fallthru
          _
        %v903 = vld [vmem:[%s546] sm:$0xf]
        %v904 = vld [vmem:[%s546 + $0x4] sm:$0xf]
        %v905 = vld [vmem:[#allocation10] sm:$0xf]
        %v906 = vld [vmem:[#allocation10 + $0x4] sm:$0xf]
        %v907 = vld [vmem:[#allocation10 + $0x8] sm:$0xf]
        %v908 = vld [vmem:[#allocation10 + $0xc] sm:$0xf]
        %v909 = vld [vmem:[#allocation12] sm:$0x1]
        %v911 = vlaneseq
        %v912 = vshrl.u32 %v911, 7
        %v913 = vsub.s32 0, %v912
        %v914 = vrot.slane %v909, %v913
        %v918 = vunpack.c.l.b16 %v903
        %v919 = vunpack.c.l.b16 %v904
        %v920 = vpack.c.b16 %v919, %v918
        %v925 = vunpack.c.l.b16 %v905
        %v926 = vunpack.c.l.b16 %v906
        %v927 = vunpack.c.l.b16 %v907
        %v928 = vunpack.c.l.b16 %v908
        %v929 = vpack.c.b16 %v926, %v925
        %v930 = vpack.c.b16 %v928, %v927
        %vm933 = vcmask 261120
        %v935 = vsel %vm933, %v920, 0
        %937 = vmatprep.subr.bf16.mxu0 0
        %938 = vmatpush1.bf16.msra.mxu0 0
        %939 = vmatprep.subr.bf16.mxu0 0
        %940 = vmatpush1.bf16.msra.mxu0 0
        %941 = vmatprep.subr.bf16.mxu0 0
        %942 = vmatpush1.bf16.msra.mxu0 0
        %943 = vmatprep.subr.bf16.mxu0 0
        %944 = vmatpush1.bf16.msra.mxu0 0
        %945 = vmatprep.subr.bf16.mxu0 0
        %946 = vmatpush1.bf16.msra.mxu0 0
        %947 = vmatprep.subr.bf16.mxu0 0
        %948 = vmatpush1.bf16.msra.mxu0 0
        %949 = vmatprep.subr.bf16.mxu0 0
        %950 = vmatpush1.bf16.msra.mxu0 %v930
        %951 = vmatprep.subr.bf16.mxu0 0
        %952 = vmatpush1.bf16.msra.mxu0 %v929
        %953 = vmatprep.subr.bf16.mxu0 0
        %954 = vmatpush2.bf16.msra.mxu0 0
        %955 = vmatprep.subr.bf16.mxu0 0
        %956 = vmatpush2.bf16.msra.mxu0 0
        %957 = vmatprep.subr.bf16.mxu0 0
        %958 = vmatpush2.bf16.msra.mxu0 0
        %959 = vmatprep.subr.bf16.mxu0 0
        %960 = vmatpush2.bf16.msra.mxu0 0
        %961 = vmatprep.subr.bf16.mxu0 0
        %962 = vmatpush2.bf16.msra.mxu0 0
        %963 = vmatprep.subr.bf16.mxu0 0
        %964 = vmatpush2.bf16.msra.mxu0 0
        %965 = vmatprep.subr.bf16.mxu0 0
        %966 = vmatpush2.bf16.msra.mxu0 0
        %967 = vmatprep.subr.bf16.mxu0 0
        %968 = vmatpush2.bf16.msra.mxu0 0
        %969 = vmatprep.mubr.bf16.mxu0 0
        %970 = vmatmul.mubr.bf16.gmra.mxu0 %v935
        %v971 = vpop.f32.mrf.mxu0
        %v972 = vadd.f32 %v914, %v971
        %v973 = vpop.f32.mrf.mxu0
        %v974 = vpop.f32.mrf.mxu0
        %v975 = vadd.f32 %v914, %v974
        %v976 = vpop.f32.mrf.mxu0
        %977 = vdwg.mxu0
        %v978 = vmul.f32 %v972, 0.35355338
        %v979 = vmul.f32 %v975, 0.35355338
        %v980 = vpack.c.bf16 %v979, %v978
        %v982 = vunpack.c.l.b16 %v980
        %v983 = vunpack.c.h.b16 %v980
        %v984 = vpack.c.b16 %v982, %v982
        %v985 = vpack.c.b16 %v983, %v983
        %v986 = vld [vmem:[#allocation2] sm:$0xf]
        %v987 = vld [vmem:[#allocation2 + $0x4] sm:$0xf]
        %v988 = vld [vmem:[#allocation2 + $0x8] sm:$0xf]
        %v989 = vld [vmem:[#allocation2 + $0xc] sm:$0xf]
        %v990 = vld [vmem:[#allocation3] sm:$0xf]
        %v991 = vld [vmem:[#allocation3 + $0x4] sm:$0xf]
        %v992 = vld [vmem:[#allocation3 + $0x8] sm:$0xf]
        %v993 = vld [vmem:[#allocation3 + $0xc] sm:$0xf]
        %v996 = vunpack.c.l.b16 %v986
        %v997 = vunpack.c.l.b16 %v987
        %v998 = vpack.c.b16 %v997, %v996
        %vm999 = vcmask 64512
        %v1001 = vsel %vm999, %v984, 0
        %v1004 = vsel %vm999, %v998, 0
        %1006 = vmatprep.subr.bf16.mxu0 0
        %1007 = vmatpush1.bf16.xpose.msra.mxu0 0
        %1008 = vmatprep.subr.bf16.mxu0 0
        %1009 = vmatpush1.bf16.xpose.msra.mxu0 0
        %1010 = vmatprep.subr.bf16.mxu0 0
        %1011 = vmatpush1.bf16.xpose.msra.mxu0 0
        %1012 = vmatprep.subr.bf16.mxu0 0
        %1013 = vmatpush1.bf16.xpose.msra.mxu0 0
        %1014 = vmatprep.subr.bf16.mxu0 0
        %1015 = vmatpush1.bf16.xpose.msra.mxu0 0
        %1016 = vmatprep.subr.bf16.mxu0 0
        %1017 = vmatpush1.bf16.xpose.msra.mxu0 0
        %1018 = vmatprep.subr.bf16.mxu0 0
        %1019 = vmatpush1.bf16.xpose.msra.mxu0 0
        %1020 = vmatprep.subr.bf16.mxu0 0
        %1021 = vmatpush1.bf16.xpose.msra.mxu0 %v1004
        %1022 = vmatprep.subr.bf16.mxu0 0
        %1023 = vmatpush2.bf16.xpose.msra.mxu0 0
        %1024 = vmatprep.subr.bf16.mxu0 0
        %1025 = vmatpush2.bf16.xpose.msra.mxu0 0
        %1026 = vmatprep.subr.bf16.mxu0 0
        %1027 = vmatpush2.bf16.xpose.msra.mxu0 0
        %1028 = vmatprep.subr.bf16.mxu0 0
        %1029 = vmatpush2.bf16.xpose.msra.mxu0 0
        %1030 = vmatprep.subr.bf16.mxu0 0
        %1031 = vmatpush2.bf16.xpose.msra.mxu0 0
        %1032 = vmatprep.subr.bf16.mxu0 0
        %1033 = vmatpush2.bf16.xpose.msra.mxu0 0
        %1034 = vmatprep.subr.bf16.mxu0 0
        %1035 = vmatpush2.bf16.xpose.msra.mxu0 0
        %1036 = vmatprep.subr.bf16.mxu0 0
        %1037 = vmatpush2.bf16.xpose.msra.mxu0 0
        %1038 = vmatprep.mubr.bf16.mxu0 0
        %1039 = vmatmul.mubr.bf16.gmra.mxu0 %v1001
        %v1040 = vpop.f32.mrf.mxu0
        %v1041 = vadd.f32 0.0, %v1040
        %v1042 = vpop.f32.mrf.mxu0
        %v1043 = vpop.f32.mrf.mxu0
        %v1044 = vpop.f32.mrf.mxu0
        %1045 = vdwg.mxu0
        %v1048 = vunpack.c.l.b16 %v988
        %v1049 = vunpack.c.l.b16 %v989
        %v1050 = vpack.c.b16 %v1049, %v1048
        %v1052 = vsel %vm999, %v985, 0
        %v1055 = vsel %vm999, %v1050, 0
        %1057 = vmatprep.subr.bf16.mxu0 0
        %1058 = vmatpush1.bf16.xpose.msra.mxu0 0
        %1059 = vmatprep.subr.bf16.mxu0 0
        %1060 = vmatpush1.bf16.xpose.msra.mxu0 0
        %1061 = vmatprep.subr.bf16.mxu0 0
        %1062 = vmatpush1.bf16.xpose.msra.mxu0 0
        %1063 = vmatprep.subr.bf16.mxu0 0
        %1064 = vmatpush1.bf16.xpose.msra.mxu0 0
        %1065 = vmatprep.subr.bf16.mxu0 0
        %1066 = vmatpush1.bf16.xpose.msra.mxu0 0
        %1067 = vmatprep.subr.bf16.mxu0 0
        %1068 = vmatpush1.bf16.xpose.msra.mxu0 0
        %1069 = vmatprep.subr.bf16.mxu0 0
        %1070 = vmatpush1.bf16.xpose.msra.mxu0 0
        %1071 = vmatprep.subr.bf16.mxu0 0
        %1072 = vmatpush1.bf16.xpose.msra.mxu0 %v1055
        %1073 = vmatprep.subr.bf16.mxu0 0
        %1074 = vmatpush2.bf16.xpose.msra.mxu0 0
        %1075 = vmatprep.subr.bf16.mxu0 0
        %1076 = vmatpush2.bf16.xpose.msra.mxu0 0
        %1077 = vmatprep.subr.bf16.mxu0 0
        %1078 = vmatpush2.bf16.xpose.msra.mxu0 0
        %1079 = vmatprep.subr.bf16.mxu0 0
        %1080 = vmatpush2.bf16.xpose.msra.mxu0 0
        %1081 = vmatprep.subr.bf16.mxu0 0
        %1082 = vmatpush2.bf16.xpose.msra.mxu0 0
        %1083 = vmatprep.subr.bf16.mxu0 0
        %1084 = vmatpush2.bf16.xpose.msra.mxu0 0
        %1085 = vmatprep.subr.bf16.mxu0 0
        %1086 = vmatpush2.bf16.xpose.msra.mxu0 0
        %1087 = vmatprep.subr.bf16.mxu0 0
        %1088 = vmatpush2.bf16.xpose.msra.mxu0 0
        %1089 = vmatprep.mubr.bf16.mxu0 0
        %1090 = vmatmul.mubr.bf16.gmra.mxu0 %v1052
        %v1091 = vpop.f32.mrf.mxu0
        %v1092 = vadd.f32 0.0, %v1091
        %v1093 = vpop.f32.mrf.mxu0
        %v1094 = vpop.f32.mrf.mxu0
        %v1095 = vpop.f32.mrf.mxu0
        %1096 = vdwg.mxu0
        %vm1097 = vcmask 130048
        %v1098 = vsel %vm1097, %v1041, -inf
        %1099 = vmax.xlane.f32.xlu0 %v1098
        %v1100 = vpop.xlane.xlu0 %1099
        %v1101 = vsel %vm1097, %v1092, -inf
        %1102 = vmax.xlane.f32.xlu0 %v1101
        %v1103 = vpop.xlane.xlu0 %1102
        %v1104 = vsub.f32 %v1041, %v1100
        %v1105 = vsub.f32 %v1092, %v1103
        %v1106 = vmul.f32 %v1104, 1.442695
        %v1107 = vpow.pop %v1106
        %v1108 = vmul.f32 %v1105, 1.442695
        %v1109 = vpow.pop %v1108
        %v1110 = vsel %vm1097, %v1107, 0.0
        %1111 = vadd.xlane.f32.xlu0 %v1110
        %v1112 = vpop.xlane.xlu0 %1111
        %v1113 = vsel %vm1097, %v1109, 0.0
        %1114 = vadd.xlane.f32.xlu0 %v1113
        %v1115 = vpop.xlane.xlu0 %1114
        %v1116 = vrcp.pop %v1112
        %v1117 = vrcp.pop %v1115
        %v1118 = vmul.f32 %v1107, %v1116
        %v1119 = vmul.f32 %v1109, %v1117
        %1120 = vst.msk [vmem:[%s643] sm:$0xff] %vm1097, %v1118
        %1121 = vst.msk [vmem:[%s643 + $0x20] sm:$0xff] %vm1097, %v1119
        %v1122 = vpack.c.bf16 %v1118, %v1118
        %v1123 = vpack.c.bf16 %v1119, %v1119
        %v1126 = vunpack.c.l.b16 %v990
        %v1127 = vunpack.c.l.b16 %v991
        %v1128 = vpack.c.b16 %v1127, %v1126
        %v1131 = vsel %vm1097, %v1122, 0
        %1133 = vmatprep.subr.bf16.mxu0 0
        %1134 = vmatpush1.bf16.msra.mxu0 0
        %1135 = vmatprep.subr.bf16.mxu0 0
        %1136 = vmatpush1.bf16.msra.mxu0 0
        %1137 = vmatprep.subr.bf16.mxu0 0
        %1138 = vmatpush1.bf16.msra.mxu0 0
        %1139 = vmatprep.subr.bf16.mxu0 0
        %1140 = vmatpush1.bf16.msra.mxu0 0
        %1141 = vmatprep.subr.bf16.mxu0 0
        %1142 = vmatpush1.bf16.msra.mxu0 0
        %1143 = vmatprep.subr.bf16.mxu0 0
        %1144 = vmatpush1.bf16.msra.mxu0 0
        %1145 = vmatprep.subr.bf16.mxu0 0
        %1146 = vmatpush1.bf16.msra.mxu0 0
        %1147 = vmatprep.subr.bf16.mxu0 0
        %1148 = vmatpush1.bf16.msra.mxu0 %v1128
        %1149 = vmatprep.subr.bf16.mxu0 0
        %1150 = vmatpush2.bf16.msra.mxu0 0
        %1151 = vmatprep.subr.bf16.mxu0 0
        %1152 = vmatpush2.bf16.msra.mxu0 0
        %1153 = vmatprep.subr.bf16.mxu0 0
        %1154 = vmatpush2.bf16.msra.mxu0 0
        %1155 = vmatprep.subr.bf16.mxu0 0
        %1156 = vmatpush2.bf16.msra.mxu0 0
        %1157 = vmatprep.subr.bf16.mxu0 0
        %1158 = vmatpush2.bf16.msra.mxu0 0
        %1159 = vmatprep.subr.bf16.mxu0 0
        %1160 = vmatpush2.bf16.msra.mxu0 0
        %1161 = vmatprep.subr.bf16.mxu0 0
        %1162 = vmatpush2.bf16.msra.mxu0 0
        %1163 = vmatprep.subr.bf16.mxu0 0
        %1164 = vmatpush2.bf16.msra.mxu0 0
        %1165 = vmatprep.mubr.bf16.mxu0 0
        %1166 = vmatmul.mubr.bf16.gmra.mxu0 %v1131
        %v1167 = vpop.f32.mrf.mxu0
        %v1168 = vadd.f32 0.0, %v1167
        %v1169 = vpop.f32.mrf.mxu0
        %v1170 = vpop.f32.mrf.mxu0
        %v1171 = vpop.f32.mrf.mxu0
        %1172 = vdwg.mxu0
        %v1175 = vunpack.c.l.b16 %v992
        %v1176 = vunpack.c.l.b16 %v993
        %v1177 = vpack.c.b16 %v1176, %v1175
        %v1180 = vsel %vm1097, %v1123, 0
        %1182 = vmatprep.subr.bf16.mxu0 0
        %1183 = vmatpush1.bf16.msra.mxu0 0
        %1184 = vmatprep.subr.bf16.mxu0 0
        %1185 = vmatpush1.bf16.msra.mxu0 0
        %1186 = vmatprep.subr.bf16.mxu0 0
        %1187 = vmatpush1.bf16.msra.mxu0 0
        %1188 = vmatprep.subr.bf16.mxu0 0
        %1189 = vmatpush1.bf16.msra.mxu0 0
        %1190 = vmatprep.subr.bf16.mxu0 0
        %1191 = vmatpush1.bf16.msra.mxu0 0
        %1192 = vmatprep.subr.bf16.mxu0 0
        %1193 = vmatpush1.bf16.msra.mxu0 0
        %1194 = vmatprep.subr.bf16.mxu0 0
        %1195 = vmatpush1.bf16.msra.mxu0 0
        %1196 = vmatprep.subr.bf16.mxu0 0
        %1197 = vmatpush1.bf16.msra.mxu0 %v1177
        %1198 = vmatprep.subr.bf16.mxu0 0
        %1199 = vmatpush2.bf16.msra.mxu0 0
        %1200 = vmatprep.subr.bf16.mxu0 0
        %1201 = vmatpush2.bf16.msra.mxu0 0
        %1202 = vmatprep.subr.bf16.mxu0 0
        %1203 = vmatpush2.bf16.msra.mxu0 0
        %1204 = vmatprep.subr.bf16.mxu0 0
        %1205 = vmatpush2.bf16.msra.mxu0 0
        %1206 = vmatprep.subr.bf16.mxu0 0
        %1207 = vmatpush2.bf16.msra.mxu0 0
        %1208 = vmatprep.subr.bf16.mxu0 0
        %1209 = vmatpush2.bf16.msra.mxu0 0
        %1210 = vmatprep.subr.bf16.mxu0 0
        %1211 = vmatpush2.bf16.msra.mxu0 0
        %1212 = vmatprep.subr.bf16.mxu0 0
        %1213 = vmatpush2.bf16.msra.mxu0 0
        %1214 = vmatprep.mubr.bf16.mxu0 0
        %1215 = vmatmul.mubr.bf16.gmra.mxu0 %v1180
        %v1216 = vpop.f32.mrf.mxu0
        %v1217 = vadd.f32 0.0, %v1216
        %v1218 = vpop.f32.mrf.mxu0
        %v1219 = vpop.f32.mrf.mxu0
        %v1220 = vpop.f32.mrf.mxu0
        %1221 = vdwg.mxu0
        %v1222 = vpack.c.bf16 %v1168, %v1168
        %v1223 = vpack.c.bf16 %v1217, %v1217
        %1224 = vrot.lane.b32.xlu0 %v984, 120
        %v1225 = vpop.permute.xlu0 %1224
        %1226 = vrot.lane.b32.xlu0 %v998, 120
        %v1227 = vpop.permute.xlu0 %1226
        %v1229 = vsel %vm999, %v1225, 0
        %v1232 = vsel %vm999, %v1227, 0
        %1234 = vmatprep.subr.bf16.mxu0 0
        %1235 = vmatpush1.bf16.xpose.msra.mxu0 0
        %1236 = vmatprep.subr.bf16.mxu0 0
        %1237 = vmatpush1.bf16.xpose.msra.mxu0 0
        %1238 = vmatprep.subr.bf16.mxu0 0
        %1239 = vmatpush1.bf16.xpose.msra.mxu0 0
        %1240 = vmatprep.subr.bf16.mxu0 0
        %1241 = vmatpush1.bf16.xpose.msra.mxu0 0
        %1242 = vmatprep.subr.bf16.mxu0 0
        %1243 = vmatpush1.bf16.xpose.msra.mxu0 0
        %1244 = vmatprep.subr.bf16.mxu0 0
        %1245 = vmatpush1.bf16.xpose.msra.mxu0 0
        %1246 = vmatprep.subr.bf16.mxu0 0
        %1247 = vmatpush1.bf16.xpose.msra.mxu0 0
        %1248 = vmatprep.subr.bf16.mxu0 0
        %1249 = vmatpush1.bf16.xpose.msra.mxu0 %v1232
        %1250 = vmatprep.subr.bf16.mxu0 0
        %1251 = vmatpush2.bf16.xpose.msra.mxu0 0
        %1252 = vmatprep.subr.bf16.mxu0 0
        %1253 = vmatpush2.bf16.xpose.msra.mxu0 0
        %1254 = vmatprep.subr.bf16.mxu0 0
        %1255 = vmatpush2.bf16.xpose.msra.mxu0 0
        %1256 = vmatprep.subr.bf16.mxu0 0
        %1257 = vmatpush2.bf16.xpose.msra.mxu0 0
        %1258 = vmatprep.subr.bf16.mxu0 0
        %1259 = vmatpush2.bf16.xpose.msra.mxu0 0
        %1260 = vmatprep.subr.bf16.mxu0 0
        %1261 = vmatpush2.bf16.xpose.msra.mxu0 0
        %1262 = vmatprep.subr.bf16.mxu0 0
        %1263 = vmatpush2.bf16.xpose.msra.mxu0 0
        %1264 = vmatprep.subr.bf16.mxu0 0
        %1265 = vmatpush2.bf16.xpose.msra.mxu0 0
        %1266 = vmatprep.mubr.bf16.mxu0 0
        %1267 = vmatmul.mubr.bf16.gmra.mxu0 %v1229
        %v1268 = vpop.f32.mrf.mxu0
        %v1269 = vadd.f32 0.0, %v1268
        %v1270 = vpop.f32.mrf.mxu0
        %v1271 = vpop.f32.mrf.mxu0
        %v1272 = vpop.f32.mrf.mxu0
        %1273 = vdwg.mxu0
        %1274 = vrot.lane.b32.xlu0 %v985, 120
        %v1275 = vpop.permute.xlu0 %1274
        %1276 = vrot.lane.b32.xlu0 %v1050, 120
        %v1277 = vpop.permute.xlu0 %1276
        %v1279 = vsel %vm999, %v1275, 0
        %v1282 = vsel %vm999, %v1277, 0
        %1284 = vmatprep.subr.bf16.mxu0 0
        %1285 = vmatpush1.bf16.xpose.msra.mxu0 0
        %1286 = vmatprep.subr.bf16.mxu0 0
        %1287 = vmatpush1.bf16.xpose.msra.mxu0 0
        %1288 = vmatprep.subr.bf16.mxu0 0
        %1289 = vmatpush1.bf16.xpose.msra.mxu0 0
        %1290 = vmatprep.subr.bf16.mxu0 0
        %1291 = vmatpush1.bf16.xpose.msra.mxu0 0
        %1292 = vmatprep.subr.bf16.mxu0 0
        %1293 = vmatpush1.bf16.xpose.msra.mxu0 0
        %1294 = vmatprep.subr.bf16.mxu0 0
        %1295 = vmatpush1.bf16.xpose.msra.mxu0 0
        %1296 = vmatprep.subr.bf16.mxu0 0
        %1297 = vmatpush1.bf16.xpose.msra.mxu0 0
        %1298 = vmatprep.subr.bf16.mxu0 0
        %1299 = vmatpush1.bf16.xpose.msra.mxu0 %v1282
        %1300 = vmatprep.subr.bf16.mxu0 0
        %1301 = vmatpush2.bf16.xpose.msra.mxu0 0
        %1302 = vmatprep.subr.bf16.mxu0 0
        %1303 = vmatpush2.bf16.xpose.msra.mxu0 0
        %1304 = vmatprep.subr.bf16.mxu0 0
        %1305 = vmatpush2.bf16.xpose.msra.mxu0 0
        %1306 = vmatprep.subr.bf16.mxu0 0
        %1307 = vmatpush2.bf16.xpose.msra.mxu0 0
        %1308 = vmatprep.subr.bf16.mxu0 0
        %1309 = vmatpush2.bf16.xpose.msra.mxu0 0
        %1310 = vmatprep.subr.bf16.mxu0 0
        %1311 = vmatpush2.bf16.xpose.msra.mxu0 0
        %1312 = vmatprep.subr.bf16.mxu0 0
        %1313 = vmatpush2.bf16.xpose.msra.mxu0 0
        %1314 = vmatprep.subr.bf16.mxu0 0
        %1315 = vmatpush2.bf16.xpose.msra.mxu0 0
        %1316 = vmatprep.mubr.bf16.mxu0 0
        %1317 = vmatmul.mubr.bf16.gmra.mxu0 %v1279
        %v1318 = vpop.f32.mrf.mxu0
        %v1319 = vadd.f32 0.0, %v1318
        %v1320 = vpop.f32.mrf.mxu0
        %v1321 = vpop.f32.mrf.mxu0
        %v1322 = vpop.f32.mrf.mxu0
        %1323 = vdwg.mxu0
        %v1324 = vsel %vm1097, %v1269, -inf
        %1325 = vmax.xlane.f32.xlu0 %v1324
        %v1326 = vpop.xlane.xlu0 %1325
        %v1327 = vsel %vm1097, %v1319, -inf
        %1328 = vmax.xlane.f32.xlu0 %v1327
        %v1329 = vpop.xlane.xlu0 %1328
        %v1330 = vsub.f32 %v1269, %v1326
        %v1331 = vsub.f32 %v1319, %v1329
        %v1332 = vmul.f32 %v1330, 1.442695
        %v1333 = vpow.pop %v1332
        %v1334 = vmul.f32 %v1331, 1.442695
        %v1335 = vpow.pop %v1334
        %v1336 = vsel %vm1097, %v1333, 0.0
        %1337 = vadd.xlane.f32.xlu0 %v1336
        %v1338 = vpop.xlane.xlu0 %1337
        %v1339 = vsel %vm1097, %v1335, 0.0
        %1340 = vadd.xlane.f32.xlu0 %v1339
        %v1341 = vpop.xlane.xlu0 %1340
        %v1342 = vrcp.pop %v1338
        %v1343 = vrcp.pop %v1341
        %v1344 = vmul.f32 %v1333, %v1342
        %v1345 = vmul.f32 %v1335, %v1343
        %s1346 = scalar_lea.vmem %s643, 8 [#allocation20]
        %1347 = vst.msk [vmem:[%s1346] sm:$0xff] %vm1097, %v1344
        %1348 = vst.msk [vmem:[%s1346 + $0x20] sm:$0xff] %vm1097, %v1345
        %v1349 = vpack.c.bf16 %v1344, %v1344
        %v1350 = vpack.c.bf16 %v1345, %v1345
        %1351 = vrot.lane.b32.xlu0 %v1128, 120
        %v1352 = vpop.permute.xlu0 %1351
        %v1355 = vsel %vm1097, %v1349, 0
        %1357 = vmatprep.subr.bf16.mxu0 0
        %1358 = vmatpush1.bf16.msra.mxu0 0
        %1359 = vmatprep.subr.bf16.mxu0 0
        %1360 = vmatpush1.bf16.msra.mxu0 0
        %1361 = vmatprep.subr.bf16.mxu0 0
        %1362 = vmatpush1.bf16.msra.mxu0 0
        %1363 = vmatprep.subr.bf16.mxu0 0
        %1364 = vmatpush1.bf16.msra.mxu0 0
        %1365 = vmatprep.subr.bf16.mxu0 0
        %1366 = vmatpush1.bf16.msra.mxu0 0
        %1367 = vmatprep.subr.bf16.mxu0 0
        %1368 = vmatpush1.bf16.msra.mxu0 0
        %1369 = vmatprep.subr.bf16.mxu0 0
        %1370 = vmatpush1.bf16.msra.mxu0 0
        %1371 = vmatprep.subr.bf16.mxu0 0
        %1372 = vmatpush1.bf16.msra.mxu0 %v1352
        %1373 = vmatprep.subr.bf16.mxu0 0
        %1374 = vmatpush2.bf16.msra.mxu0 0
        %1375 = vmatprep.subr.bf16.mxu0 0
        %1376 = vmatpush2.bf16.msra.mxu0 0
        %1377 = vmatprep.subr.bf16.mxu0 0
        %1378 = vmatpush2.bf16.msra.mxu0 0
        %1379 = vmatprep.subr.bf16.mxu0 0
        %1380 = vmatpush2.bf16.msra.mxu0 0
        %1381 = vmatprep.subr.bf16.mxu0 0
        %1382 = vmatpush2.bf16.msra.mxu0 0
        %1383 = vmatprep.subr.bf16.mxu0 0
        %1384 = vmatpush2.bf16.msra.mxu0 0
        %1385 = vmatprep.subr.bf16.mxu0 0
        %1386 = vmatpush2.bf16.msra.mxu0 0
        %1387 = vmatprep.subr.bf16.mxu0 0
        %1388 = vmatpush2.bf16.msra.mxu0 0
        %1389 = vmatprep.mubr.bf16.mxu0 0
        %1390 = vmatmul.mubr.bf16.gmra.mxu0 %v1355
        %v1391 = vpop.f32.mrf.mxu0
        %v1392 = vadd.f32 0.0, %v1391
        %v1393 = vpop.f32.mrf.mxu0
        %v1394 = vpop.f32.mrf.mxu0
        %v1395 = vpop.f32.mrf.mxu0
        %1396 = vdwg.mxu0
        %1397 = vrot.lane.b32.xlu0 %v1177, 120
        %v1398 = vpop.permute.xlu0 %1397
        %v1401 = vsel %vm1097, %v1350, 0
        %1403 = vmatprep.subr.bf16.mxu0 0
        %1404 = vmatpush1.bf16.msra.mxu0 0
        %1405 = vmatprep.subr.bf16.mxu0 0
        %1406 = vmatpush1.bf16.msra.mxu0 0
        %1407 = vmatprep.subr.bf16.mxu0 0
        %1408 = vmatpush1.bf16.msra.mxu0 0
        %1409 = vmatprep.subr.bf16.mxu0 0
        %1410 = vmatpush1.bf16.msra.mxu0 0
        %1411 = vmatprep.subr.bf16.mxu0 0
        %1412 = vmatpush1.bf16.msra.mxu0 0
        %1413 = vmatprep.subr.bf16.mxu0 0
        %1414 = vmatpush1.bf16.msra.mxu0 0
        %1415 = vmatprep.subr.bf16.mxu0 0
        %1416 = vmatpush1.bf16.msra.mxu0 0
        %1417 = vmatprep.subr.bf16.mxu0 0
        %1418 = vmatpush1.bf16.msra.mxu0 %v1398
        %1419 = vmatprep.subr.bf16.mxu0 0
        %1420 = vmatpush2.bf16.msra.mxu0 0
        %1421 = vmatprep.subr.bf16.mxu0 0
        %1422 = vmatpush2.bf16.msra.mxu0 0
        %1423 = vmatprep.subr.bf16.mxu0 0
        %1424 = vmatpush2.bf16.msra.mxu0 0
        %1425 = vmatprep.subr.bf16.mxu0 0
        %1426 = vmatpush2.bf16.msra.mxu0 0
        %1427 = vmatprep.subr.bf16.mxu0 0
        %1428 = vmatpush2.bf16.msra.mxu0 0
        %1429 = vmatprep.subr.bf16.mxu0 0
        %1430 = vmatpush2.bf16.msra.mxu0 0
        %1431 = vmatprep.subr.bf16.mxu0 0
        %1432 = vmatpush2.bf16.msra.mxu0 0
        %1433 = vmatprep.subr.bf16.mxu0 0
        %1434 = vmatpush2.bf16.msra.mxu0 0
        %1435 = vmatprep.mubr.bf16.mxu0 0
        %1436 = vmatmul.mubr.bf16.gmra.mxu0 %v1401
        %v1437 = vpop.f32.mrf.mxu0
        %v1438 = vadd.f32 0.0, %v1437
        %v1439 = vpop.f32.mrf.mxu0
        %v1440 = vpop.f32.mrf.mxu0
        %v1441 = vpop.f32.mrf.mxu0
        %1442 = vdwg.mxu0
        %v1443 = vpack.c.bf16 %v1392, %v1392
        %v1444 = vpack.c.bf16 %v1438, %v1438
        %1445 = vrot.lane.b32.xlu0 %v984, 112
        %v1446 = vpop.permute.xlu0 %1445
        %1447 = vrot.lane.b32.xlu0 %v998, 112
        %v1448 = vpop.permute.xlu0 %1447
        %v1450 = vsel %vm999, %v1446, 0
        %v1453 = vsel %vm999, %v1448, 0
        %1455 = vmatprep.subr.bf16.mxu0 0
        %1456 = vmatpush1.bf16.xpose.msra.mxu0 0
        %1457 = vmatprep.subr.bf16.mxu0 0
        %1458 = vmatpush1.bf16.xpose.msra.mxu0 0
        %1459 = vmatprep.subr.bf16.mxu0 0
        %1460 = vmatpush1.bf16.xpose.msra.mxu0 0
        %1461 = vmatprep.subr.bf16.mxu0 0
        %1462 = vmatpush1.bf16.xpose.msra.mxu0 0
        %1463 = vmatprep.subr.bf16.mxu0 0
        %1464 = vmatpush1.bf16.xpose.msra.mxu0 0
        %1465 = vmatprep.subr.bf16.mxu0 0
        %1466 = vmatpush1.bf16.xpose.msra.mxu0 0
        %1467 = vmatprep.subr.bf16.mxu0 0
        %1468 = vmatpush1.bf16.xpose.msra.mxu0 0
        %1469 = vmatprep.subr.bf16.mxu0 0
        %1470 = vmatpush1.bf16.xpose.msra.mxu0 %v1453
        %1471 = vmatprep.subr.bf16.mxu0 0
        %1472 = vmatpush2.bf16.xpose.msra.mxu0 0
        %1473 = vmatprep.subr.bf16.mxu0 0
        %1474 = vmatpush2.bf16.xpose.msra.mxu0 0
        %1475 = vmatprep.subr.bf16.mxu0 0
        %1476 = vmatpush2.bf16.xpose.msra.mxu0 0
        %1477 = vmatprep.subr.bf16.mxu0 0
        %1478 = vmatpush2.bf16.xpose.msra.mxu0 0
        %1479 = vmatprep.subr.bf16.mxu0 0
        %1480 = vmatpush2.bf16.xpose.msra.mxu0 0
        %1481 = vmatprep.subr.bf16.mxu0 0
        %1482 = vmatpush2.bf16.xpose.msra.mxu0 0
        %1483 = vmatprep.subr.bf16.mxu0 0
        %1484 = vmatpush2.bf16.xpose.msra.mxu0 0
        %1485 = vmatprep.subr.bf16.mxu0 0
        %1486 = vmatpush2.bf16.xpose.msra.mxu0 0
        %1487 = vmatprep.mubr.bf16.mxu0 0
        %1488 = vmatmul.mubr.bf16.gmra.mxu0 %v1450
        %v1489 = vpop.f32.mrf.mxu0
        %v1490 = vadd.f32 0.0, %v1489
        %v1491 = vpop.f32.mrf.mxu0
        %v1492 = vpop.f32.mrf.mxu0
        %v1493 = vpop.f32.mrf.mxu0
        %1494 = vdwg.mxu0
        %1495 = vrot.lane.b32.xlu0 %v985, 112
        %v1496 = vpop.permute.xlu0 %1495
        %1497 = vrot.lane.b32.xlu0 %v1050, 112
        %v1498 = vpop.permute.xlu0 %1497
        %v1500 = vsel %vm999, %v1496, 0
        %v1503 = vsel %vm999, %v1498, 0
        %1505 = vmatprep.subr.bf16.mxu0 0
        %1506 = vmatpush1.bf16.xpose.msra.mxu0 0
        %1507 = vmatprep.subr.bf16.mxu0 0
        %1508 = vmatpush1.bf16.xpose.msra.mxu0 0
        %1509 = vmatprep.subr.bf16.mxu0 0
        %1510 = vmatpush1.bf16.xpose.msra.mxu0 0
        %1511 = vmatprep.subr.bf16.mxu0 0
        %1512 = vmatpush1.bf16.xpose.msra.mxu0 0
        %1513 = vmatprep.subr.bf16.mxu0 0
        %1514 = vmatpush1.bf16.xpose.msra.mxu0 0
        %1515 = vmatprep.subr.bf16.mxu0 0
        %1516 = vmatpush1.bf16.xpose.msra.mxu0 0
        %1517 = vmatprep.subr.bf16.mxu0 0
        %1518 = vmatpush1.bf16.xpose.msra.mxu0 0
        %1519 = vmatprep.subr.bf16.mxu0 0
        %1520 = vmatpush1.bf16.xpose.msra.mxu0 %v1503
        %1521 = vmatprep.subr.bf16.mxu0 0
        %1522 = vmatpush2.bf16.xpose.msra.mxu0 0
        %1523 = vmatprep.subr.bf16.mxu0 0
        %1524 = vmatpush2.bf16.xpose.msra.mxu0 0
        %1525 = vmatprep.subr.bf16.mxu0 0
        %1526 = vmatpush2.bf16.xpose.msra.mxu0 0
        %1527 = vmatprep.subr.bf16.mxu0 0
        %1528 = vmatpush2.bf16.xpose.msra.mxu0 0
        %1529 = vmatprep.subr.bf16.mxu0 0
        %1530 = vmatpush2.bf16.xpose.msra.mxu0 0
        %1531 = vmatprep.subr.bf16.mxu0 0
        %1532 = vmatpush2.bf16.xpose.msra.mxu0 0
        %1533 = vmatprep.subr.bf16.mxu0 0
        %1534 = vmatpush2.bf16.xpose.msra.mxu0 0
        %1535 = vmatprep.subr.bf16.mxu0 0
        %1536 = vmatpush2.bf16.xpose.msra.mxu0 0
        %1537 = vmatprep.mubr.bf16.mxu0 0
        %1538 = vmatmul.mubr.bf16.gmra.mxu0 %v1500
        %v1539 = vpop.f32.mrf.mxu0
        %v1540 = vadd.f32 0.0, %v1539
        %v1541 = vpop.f32.mrf.mxu0
        %v1542 = vpop.f32.mrf.mxu0
        %v1543 = vpop.f32.mrf.mxu0
        %1544 = vdwg.mxu0
        %v1545 = vsel %vm1097, %v1490, -inf
        %1546 = vmax.xlane.f32.xlu0 %v1545
        %v1547 = vpop.xlane.xlu0 %1546
        %v1548 = vsel %vm1097, %v1540, -inf
        %1549 = vmax.xlane.f32.xlu0 %v1548
        %v1550 = vpop.xlane.xlu0 %1549
        %v1551 = vsub.f32 %v1490, %v1547
        %v1552 = vsub.f32 %v1540, %v1550
        %v1553 = vmul.f32 %v1551, 1.442695
        %v1554 = vpow.pop %v1553
        %v1555 = vmul.f32 %v1552, 1.442695
        %v1556 = vpow.pop %v1555
        %v1557 = vsel %vm1097, %v1554, 0.0
        %1558 = vadd.xlane.f32.xlu0 %v1557
        %v1559 = vpop.xlane.xlu0 %1558
        %v1560 = vsel %vm1097, %v1556, 0.0
        %1561 = vadd.xlane.f32.xlu0 %v1560
        %v1562 = vpop.xlane.xlu0 %1561
        %v1563 = vrcp.pop %v1559
        %v1564 = vrcp.pop %v1562
        %v1565 = vmul.f32 %v1554, %v1563
        %v1566 = vmul.f32 %v1556, %v1564
        %s1567 = scalar_lea.vmem %s643, 16 [#allocation20]
        %1568 = vst.msk [vmem:[%s1567] sm:$0xff] %vm1097, %v1565
        %1569 = vst.msk [vmem:[%s1567 + $0x20] sm:$0xff] %vm1097, %v1566
        %v1570 = vpack.c.bf16 %v1565, %v1565
        %v1571 = vpack.c.bf16 %v1566, %v1566
        %1572 = vrot.lane.b32.xlu0 %v1128, 112
        %v1573 = vpop.permute.xlu0 %1572
        %v1576 = vsel %vm1097, %v1570, 0
        %1578 = vmatprep.subr.bf16.mxu0 0
        %1579 = vmatpush1.bf16.msra.mxu0 0
        %1580 = vmatprep.subr.bf16.mxu0 0
        %1581 = vmatpush1.bf16.msra.mxu0 0
        %1582 = vmatprep.subr.bf16.mxu0 0
        %1583 = vmatpush1.bf16.msra.mxu0 0
        %1584 = vmatprep.subr.bf16.mxu0 0
        %1585 = vmatpush1.bf16.msra.mxu0 0
        %1586 = vmatprep.subr.bf16.mxu0 0
        %1587 = vmatpush1.bf16.msra.mxu0 0
        %1588 = vmatprep.subr.bf16.mxu0 0
        %1589 = vmatpush1.bf16.msra.mxu0 0
        %1590 = vmatprep.subr.bf16.mxu0 0
        %1591 = vmatpush1.bf16.msra.mxu0 0
        %1592 = vmatprep.subr.bf16.mxu0 0
        %1593 = vmatpush1.bf16.msra.mxu0 %v1573
        %1594 = vmatprep.subr.bf16.mxu0 0
        %1595 = vmatpush2.bf16.msra.mxu0 0
        %1596 = vmatprep.subr.bf16.mxu0 0
        %1597 = vmatpush2.bf16.msra.mxu0 0
        %1598 = vmatprep.subr.bf16.mxu0 0
        %1599 = vmatpush2.bf16.msra.mxu0 0
        %1600 = vmatprep.subr.bf16.mxu0 0
        %1601 = vmatpush2.bf16.msra.mxu0 0
        %1602 = vmatprep.subr.bf16.mxu0 0
        %1603 = vmatpush2.bf16.msra.mxu0 0
        %1604 = vmatprep.subr.bf16.mxu0 0
        %1605 = vmatpush2.bf16.msra.mxu0 0
        %1606 = vmatprep.subr.bf16.mxu0 0
        %1607 = vmatpush2.bf16.msra.mxu0 0
        %1608 = vmatprep.subr.bf16.mxu0 0
        %1609 = vmatpush2.bf16.msra.mxu0 0
        %1610 = vmatprep.mubr.bf16.mxu0 0
        %1611 = vmatmul.mubr.bf16.gmra.mxu0 %v1576
        %v1612 = vpop.f32.mrf.mxu0
        %v1613 = vadd.f32 0.0, %v1612
        %v1614 = vpop.f32.mrf.mxu0
        %v1615 = vpop.f32.mrf.mxu0
        %v1616 = vpop.f32.mrf.mxu0
        %1617 = vdwg.mxu0
        %1618 = vrot.lane.b32.xlu0 %v1177, 112
        %v1619 = vpop.permute.xlu0 %1618
        %v1622 = vsel %vm1097, %v1571, 0
        %1624 = vmatprep.subr.bf16.mxu0 0
        %1625 = vmatpush1.bf16.msra.mxu0 0
        %1626 = vmatprep.subr.bf16.mxu0 0
        %1627 = vmatpush1.bf16.msra.mxu0 0
        %1628 = vmatprep.subr.bf16.mxu0 0
        %1629 = vmatpush1.bf16.msra.mxu0 0
        %1630 = vmatprep.subr.bf16.mxu0 0
        %1631 = vmatpush1.bf16.msra.mxu0 0
        %1632 = vmatprep.subr.bf16.mxu0 0
        %1633 = vmatpush1.bf16.msra.mxu0 0
        %1634 = vmatprep.subr.bf16.mxu0 0
        %1635 = vmatpush1.bf16.msra.mxu0 0
        %1636 = vmatprep.subr.bf16.mxu0 0
        %1637 = vmatpush1.bf16.msra.mxu0 0
        %1638 = vmatprep.subr.bf16.mxu0 0
        %1639 = vmatpush1.bf16.msra.mxu0 %v1619
        %1640 = vmatprep.subr.bf16.mxu0 0
        %1641 = vmatpush2.bf16.msra.mxu0 0
        %1642 = vmatprep.subr.bf16.mxu0 0
        %1643 = vmatpush2.bf16.msra.mxu0 0
        %1644 = vmatprep.subr.bf16.mxu0 0
        %1645 = vmatpush2.bf16.msra.mxu0 0
        %1646 = vmatprep.subr.bf16.mxu0 0
        %1647 = vmatpush2.bf16.msra.mxu0 0
        %1648 = vmatprep.subr.bf16.mxu0 0
        %1649 = vmatpush2.bf16.msra.mxu0 0
        %1650 = vmatprep.subr.bf16.mxu0 0
        %1651 = vmatpush2.bf16.msra.mxu0 0
        %1652 = vmatprep.subr.bf16.mxu0 0
        %1653 = vmatpush2.bf16.msra.mxu0 0
        %1654 = vmatprep.subr.bf16.mxu0 0
        %1655 = vmatpush2.bf16.msra.mxu0 0
        %1656 = vmatprep.mubr.bf16.mxu0 0
        %1657 = vmatmul.mubr.bf16.gmra.mxu0 %v1622
        %v1658 = vpop.f32.mrf.mxu0
        %v1659 = vadd.f32 0.0, %v1658
        %v1660 = vpop.f32.mrf.mxu0
        %v1661 = vpop.f32.mrf.mxu0
        %v1662 = vpop.f32.mrf.mxu0
        %1663 = vdwg.mxu0
        %v1664 = vpack.c.bf16 %v1613, %v1613
        %v1665 = vpack.c.bf16 %v1659, %v1659
        %1666 = vrot.lane.b32.xlu0 %v984, 104
        %v1667 = vpop.permute.xlu0 %1666
        %1668 = vrot.lane.b32.xlu0 %v998, 104
        %v1669 = vpop.permute.xlu0 %1668
        %v1671 = vsel %vm999, %v1667, 0
        %v1674 = vsel %vm999, %v1669, 0
        %1676 = vmatprep.subr.bf16.mxu0 0
        %1677 = vmatpush1.bf16.xpose.msra.mxu0 0
        %1678 = vmatprep.subr.bf16.mxu0 0
        %1679 = vmatpush1.bf16.xpose.msra.mxu0 0
        %1680 = vmatprep.subr.bf16.mxu0 0
        %1681 = vmatpush1.bf16.xpose.msra.mxu0 0
        %1682 = vmatprep.subr.bf16.mxu0 0
        %1683 = vmatpush1.bf16.xpose.msra.mxu0 0
        %1684 = vmatprep.subr.bf16.mxu0 0
        %1685 = vmatpush1.bf16.xpose.msra.mxu0 0
        %1686 = vmatprep.subr.bf16.mxu0 0
        %1687 = vmatpush1.bf16.xpose.msra.mxu0 0
        %1688 = vmatprep.subr.bf16.mxu0 0
        %1689 = vmatpush1.bf16.xpose.msra.mxu0 0
        %1690 = vmatprep.subr.bf16.mxu0 0
        %1691 = vmatpush1.bf16.xpose.msra.mxu0 %v1674
        %1692 = vmatprep.subr.bf16.mxu0 0
        %1693 = vmatpush2.bf16.xpose.msra.mxu0 0
        %1694 = vmatprep.subr.bf16.mxu0 0
        %1695 = vmatpush2.bf16.xpose.msra.mxu0 0
        %1696 = vmatprep.subr.bf16.mxu0 0
        %1697 = vmatpush2.bf16.xpose.msra.mxu0 0
        %1698 = vmatprep.subr.bf16.mxu0 0
        %1699 = vmatpush2.bf16.xpose.msra.mxu0 0
        %1700 = vmatprep.subr.bf16.mxu0 0
        %1701 = vmatpush2.bf16.xpose.msra.mxu0 0
        %1702 = vmatprep.subr.bf16.mxu0 0
        %1703 = vmatpush2.bf16.xpose.msra.mxu0 0
        %1704 = vmatprep.subr.bf16.mxu0 0
        %1705 = vmatpush2.bf16.xpose.msra.mxu0 0
        %1706 = vmatprep.subr.bf16.mxu0 0
        %1707 = vmatpush2.bf16.xpose.msra.mxu0 0
        %1708 = vmatprep.mubr.bf16.mxu0 0
        %1709 = vmatmul.mubr.bf16.gmra.mxu0 %v1671
        %v1710 = vpop.f32.mrf.mxu0
        %v1711 = vadd.f32 0.0, %v1710
        %v1712 = vpop.f32.mrf.mxu0
        %v1713 = vpop.f32.mrf.mxu0
        %v1714 = vpop.f32.mrf.mxu0
        %1715 = vdwg.mxu0
        %1716 = vrot.lane.b32.xlu0 %v985, 104
        %v1717 = vpop.permute.xlu0 %1716
        %1718 = vrot.lane.b32.xlu0 %v1050, 104
        %v1719 = vpop.permute.xlu0 %1718
        %v1721 = vsel %vm999, %v1717, 0
        %v1724 = vsel %vm999, %v1719, 0
        %1726 = vmatprep.subr.bf16.mxu0 0
        %1727 = vmatpush1.bf16.xpose.msra.mxu0 0
        %1728 = vmatprep.subr.bf16.mxu0 0
        %1729 = vmatpush1.bf16.xpose.msra.mxu0 0
        %1730 = vmatprep.subr.bf16.mxu0 0
        %1731 = vmatpush1.bf16.xpose.msra.mxu0 0
        %1732 = vmatprep.subr.bf16.mxu0 0
        %1733 = vmatpush1.bf16.xpose.msra.mxu0 0
        %1734 = vmatprep.subr.bf16.mxu0 0
        %1735 = vmatpush1.bf16.xpose.msra.mxu0 0
        %1736 = vmatprep.subr.bf16.mxu0 0
        %1737 = vmatpush1.bf16.xpose.msra.mxu0 0
        %1738 = vmatprep.subr.bf16.mxu0 0
        %1739 = vmatpush1.bf16.xpose.msra.mxu0 0
        %1740 = vmatprep.subr.bf16.mxu0 0
        %1741 = vmatpush1.bf16.xpose.msra.mxu0 %v1724
        %1742 = vmatprep.subr.bf16.mxu0 0
        %1743 = vmatpush2.bf16.xpose.msra.mxu0 0
        %1744 = vmatprep.subr.bf16.mxu0 0
        %1745 = vmatpush2.bf16.xpose.msra.mxu0 0
        %1746 = vmatprep.subr.bf16.mxu0 0
        %1747 = vmatpush2.bf16.xpose.msra.mxu0 0
        %1748 = vmatprep.subr.bf16.mxu0 0
        %1749 = vmatpush2.bf16.xpose.msra.mxu0 0
        %1750 = vmatprep.subr.bf16.mxu0 0
        %1751 = vmatpush2.bf16.xpose.msra.mxu0 0
        %1752 = vmatprep.subr.bf16.mxu0 0
        %1753 = vmatpush2.bf16.xpose.msra.mxu0 0
        %1754 = vmatprep.subr.bf16.mxu0 0
        %1755 = vmatpush2.bf16.xpose.msra.mxu0 0
        %1756 = vmatprep.subr.bf16.mxu0 0
        %1757 = vmatpush2.bf16.xpose.msra.mxu0 0
        %1758 = vmatprep.mubr.bf16.mxu0 0
        %1759 = vmatmul.mubr.bf16.gmra.mxu0 %v1721
        %v1760 = vpop.f32.mrf.mxu0
        %v1761 = vadd.f32 0.0, %v1760
        %v1762 = vpop.f32.mrf.mxu0
        %v1763 = vpop.f32.mrf.mxu0
        %v1764 = vpop.f32.mrf.mxu0
        %1765 = vdwg.mxu0
        %v1766 = vsel %vm1097, %v1711, -inf
        %1767 = vmax.xlane.f32.xlu0 %v1766
        %v1768 = vpop.xlane.xlu0 %1767
        %v1769 = vsel %vm1097, %v1761, -inf
        %1770 = vmax.xlane.f32.xlu0 %v1769
        %v1771 = vpop.xlane.xlu0 %1770
        %v1772 = vsub.f32 %v1711, %v1768
        %v1773 = vsub.f32 %v1761, %v1771
        %v1774 = vmul.f32 %v1772, 1.442695
        %v1775 = vpow.pop %v1774
        %v1776 = vmul.f32 %v1773, 1.442695
        %v1777 = vpow.pop %v1776
        %v1778 = vsel %vm1097, %v1775, 0.0
        %1779 = vadd.xlane.f32.xlu0 %v1778
        %v1780 = vpop.xlane.xlu0 %1779
        %v1781 = vsel %vm1097, %v1777, 0.0
        %1782 = vadd.xlane.f32.xlu0 %v1781
        %v1783 = vpop.xlane.xlu0 %1782
        %v1784 = vrcp.pop %v1780
        %v1785 = vrcp.pop %v1783
        %v1786 = vmul.f32 %v1775, %v1784
        %v1787 = vmul.f32 %v1777, %v1785
        %s1788 = scalar_lea.vmem %s643, 24 [#allocation20]
        %1789 = vst.msk [vmem:[%s1788] sm:$0xff] %vm1097, %v1786
        %1790 = vst.msk [vmem:[%s1788 + $0x20] sm:$0xff] %vm1097, %v1787
        %v1791 = vpack.c.bf16 %v1786, %v1786
        %v1792 = vpack.c.bf16 %v1787, %v1787
        %1793 = vrot.lane.b32.xlu0 %v1128, 104
        %v1794 = vpop.permute.xlu0 %1793
        %v1797 = vsel %vm1097, %v1791, 0
        %1799 = vmatprep.subr.bf16.mxu0 0
        %1800 = vmatpush1.bf16.msra.mxu0 0
        %1801 = vmatprep.subr.bf16.mxu0 0
        %1802 = vmatpush1.bf16.msra.mxu0 0
        %1803 = vmatprep.subr.bf16.mxu0 0
        %1804 = vmatpush1.bf16.msra.mxu0 0
        %1805 = vmatprep.subr.bf16.mxu0 0
        %1806 = vmatpush1.bf16.msra.mxu0 0
        %1807 = vmatprep.subr.bf16.mxu0 0
        %1808 = vmatpush1.bf16.msra.mxu0 0
        %1809 = vmatprep.subr.bf16.mxu0 0
        %1810 = vmatpush1.bf16.msra.mxu0 0
        %1811 = vmatprep.subr.bf16.mxu0 0
        %1812 = vmatpush1.bf16.msra.mxu0 0
        %1813 = vmatprep.subr.bf16.mxu0 0
        %1814 = vmatpush1.bf16.msra.mxu0 %v1794
        %1815 = vmatprep.subr.bf16.mxu0 0
        %1816 = vmatpush2.bf16.msra.mxu0 0
        %1817 = vmatprep.subr.bf16.mxu0 0
        %1818 = vmatpush2.bf16.msra.mxu0 0
        %1819 = vmatprep.subr.bf16.mxu0 0
        %1820 = vmatpush2.bf16.msra.mxu0 0
        %1821 = vmatprep.subr.bf16.mxu0 0
        %1822 = vmatpush2.bf16.msra.mxu0 0
        %1823 = vmatprep.subr.bf16.mxu0 0
        %1824 = vmatpush2.bf16.msra.mxu0 0
        %1825 = vmatprep.subr.bf16.mxu0 0
        %1826 = vmatpush2.bf16.msra.mxu0 0
        %1827 = vmatprep.subr.bf16.mxu0 0
        %1828 = vmatpush2.bf16.msra.mxu0 0
        %1829 = vmatprep.subr.bf16.mxu0 0
        %1830 = vmatpush2.bf16.msra.mxu0 0
        %1831 = vmatprep.mubr.bf16.mxu0 0
        %1832 = vmatmul.mubr.bf16.gmra.mxu0 %v1797
        %v1833 = vpop.f32.mrf.mxu0
        %v1834 = vadd.f32 0.0, %v1833
        %v1835 = vpop.f32.mrf.mxu0
        %v1836 = vpop.f32.mrf.mxu0
        %v1837 = vpop.f32.mrf.mxu0
        %1838 = vdwg.mxu0
        %1839 = vrot.lane.b32.xlu0 %v1177, 104
        %v1840 = vpop.permute.xlu0 %1839
        %v1843 = vsel %vm1097, %v1792, 0
        %1845 = vmatprep.subr.bf16.mxu0 0
        %1846 = vmatpush1.bf16.msra.mxu0 0
        %1847 = vmatprep.subr.bf16.mxu0 0
        %1848 = vmatpush1.bf16.msra.mxu0 0
        %1849 = vmatprep.subr.bf16.mxu0 0
        %1850 = vmatpush1.bf16.msra.mxu0 0
        %1851 = vmatprep.subr.bf16.mxu0 0
        %1852 = vmatpush1.bf16.msra.mxu0 0
        %1853 = vmatprep.subr.bf16.mxu0 0
        %1854 = vmatpush1.bf16.msra.mxu0 0
        %1855 = vmatprep.subr.bf16.mxu0 0
        %1856 = vmatpush1.bf16.msra.mxu0 0
        %1857 = vmatprep.subr.bf16.mxu0 0
        %1858 = vmatpush1.bf16.msra.mxu0 0
        %1859 = vmatprep.subr.bf16.mxu0 0
        %1860 = vmatpush1.bf16.msra.mxu0 %v1840
        %1861 = vmatprep.subr.bf16.mxu0 0
        %1862 = vmatpush2.bf16.msra.mxu0 0
        %1863 = vmatprep.subr.bf16.mxu0 0
        %1864 = vmatpush2.bf16.msra.mxu0 0
        %1865 = vmatprep.subr.bf16.mxu0 0
        %1866 = vmatpush2.bf16.msra.mxu0 0
        %1867 = vmatprep.subr.bf16.mxu0 0
        %1868 = vmatpush2.bf16.msra.mxu0 0
        %1869 = vmatprep.subr.bf16.mxu0 0
        %1870 = vmatpush2.bf16.msra.mxu0 0
        %1871 = vmatprep.subr.bf16.mxu0 0
        %1872 = vmatpush2.bf16.msra.mxu0 0
        %1873 = vmatprep.subr.bf16.mxu0 0
        %1874 = vmatpush2.bf16.msra.mxu0 0
        %1875 = vmatprep.subr.bf16.mxu0 0
        %1876 = vmatpush2.bf16.msra.mxu0 0
        %1877 = vmatprep.mubr.bf16.mxu0 0
        %1878 = vmatmul.mubr.bf16.gmra.mxu0 %v1843
        %v1879 = vpop.f32.mrf.mxu0
        %v1880 = vadd.f32 0.0, %v1879
        %v1881 = vpop.f32.mrf.mxu0
        %v1882 = vpop.f32.mrf.mxu0
        %v1883 = vpop.f32.mrf.mxu0
        %1884 = vdwg.mxu0
        %v1885 = vpack.c.bf16 %v1834, %v1834
        %v1886 = vpack.c.bf16 %v1880, %v1880
        %1889 = vrot.lane.b32.xlu0 %v1443, 8
        %v1890 = vpop.permute.xlu0 %1889
        %1891 = vrot.lane.b32.xlu0 %v1444, 8
        %v1892 = vpop.permute.xlu0 %1891
        %1895 = vrot.lane.b32.xlu0 %v1664, 16
        %v1896 = vpop.permute.xlu0 %1895
        %1897 = vrot.lane.b32.xlu0 %v1665, 16
        %v1898 = vpop.permute.xlu0 %1897
        %1901 = vrot.lane.b32.xlu0 %v1885, 24
        %v1902 = vpop.permute.xlu0 %1901
        %1903 = vrot.lane.b32.xlu0 %v1886, 24
        %v1904 = vpop.permute.xlu0 %1903
        %v1907 = vsel %vm999, %v1222, %v1890
        %v1910 = vsel %vm999, %v1223, %v1892
        %v1912 = vsel %vm1097, %v1907, %v1896
        %v1914 = vsel %vm1097, %v1910, %v1898
        %vm1915 = vcmask 195584
        %v1917 = vsel %vm1915, %v1912, %v1902
        %v1919 = vsel %vm1915, %v1914, %v1904
        %v1920 = vld [vmem:[%s9] sm:$0xf]
        %v1921 = vld [vmem:[%s9 + $0x4] sm:$0xf]
        %v1922 = vld [vmem:[%s9 + $0x8] sm:$0xf]
        %v1923 = vld [vmem:[%s9 + $0xc] sm:$0xf]
        %v1924 = vld [vmem:[%s10] sm:$0x1]
        %v1926 = vlaneseq
        %v1927 = vshrl.u32 %v1926, 7
        %v1928 = vsub.s32 0, %v1927
        %v1929 = vrot.slane %v1924, %v1928
        %v1933 = vunpack.c.l.b16 %v1917
        %v1934 = vunpack.c.l.b16 %v1919
        %v1935 = vpack.c.b16 %v1934, %v1933
        %v1940 = vunpack.c.l.b16 %v1920
        %v1941 = vunpack.c.l.b16 %v1921
        %v1942 = vunpack.c.l.b16 %v1922
        %v1943 = vunpack.c.l.b16 %v1923
        %v1944 = vpack.c.b16 %v1941, %v1940
        %v1945 = vpack.c.b16 %v1943, %v1942
        %v1949 = vsel %vm933, %v1935, 0
        %1951 = vmatprep.subr.bf16.mxu0 0
        %1952 = vmatpush1.bf16.msra.mxu0 0
        %1953 = vmatprep.subr.bf16.mxu0 0
        %1954 = vmatpush1.bf16.msra.mxu0 0
        %1955 = vmatprep.subr.bf16.mxu0 0
        %1956 = vmatpush1.bf16.msra.mxu0 0
        %1957 = vmatprep.subr.bf16.mxu0 0
        %1958 = vmatpush1.bf16.msra.mxu0 0
        %1959 = vmatprep.subr.bf16.mxu0 0
        %1960 = vmatpush1.bf16.msra.mxu0 0
        %1961 = vmatprep.subr.bf16.mxu0 0
        %1962 = vmatpush1.bf16.msra.mxu0 0
        %1963 = vmatprep.subr.bf16.mxu0 0
        %1964 = vmatpush1.bf16.msra.mxu0 %v1945
        %1965 = vmatprep.subr.bf16.mxu0 0
        %1966 = vmatpush1.bf16.msra.mxu0 %v1944
        %1967 = vmatprep.subr.bf16.mxu0 0
        %1968 = vmatpush2.bf16.msra.mxu0 0
        %1969 = vmatprep.subr.bf16.mxu0 0
        %1970 = vmatpush2.bf16.msra.mxu0 0
        %1971 = vmatprep.subr.bf16.mxu0 0
        %1972 = vmatpush2.bf16.msra.mxu0 0
        %1973 = vmatprep.subr.bf16.mxu0 0
        %1974 = vmatpush2.bf16.msra.mxu0 0
        %1975 = vmatprep.subr.bf16.mxu0 0
        %1976 = vmatpush2.bf16.msra.mxu0 0
        %1977 = vmatprep.subr.bf16.mxu0 0
        %1978 = vmatpush2.bf16.msra.mxu0 0
        %1979 = vmatprep.subr.bf16.mxu0 0
        %1980 = vmatpush2.bf16.msra.mxu0 0
        %1981 = vmatprep.subr.bf16.mxu0 0
        %1982 = vmatpush2.bf16.msra.mxu0 0
        %1983 = vmatprep.mubr.bf16.mxu0 0
        %1984 = vmatmul.mubr.bf16.gmra.mxu0 %v1949
        %v1985 = vpop.f32.mrf.mxu0
        %v1986 = vadd.f32 %v1929, %v1985
        %v1987 = vpop.f32.mrf.mxu0
        %v1988 = vpop.f32.mrf.mxu0
        %v1989 = vadd.f32 %v1929, %v1988
        %v1990 = vpop.f32.mrf.mxu0
        %1991 = vdwg.mxu0
        %1992 = vst.msk [vmem:[%s636] sm:$0xff] %vm933, %v1986
        %1993 = vst.msk [vmem:[%s636 + $0x8] sm:$0xff] %vm933, %v1989
        %s1994 = sand.u32 %s309, 1
        %s1995 = scalar_lea.sflag [#allocation6], %s1994
        %s1996 = sand.u32 %s309, 1
        %s1997 = smul.addr %s1996, 16
        %s1998 = scalar_lea.vmem [#allocation19], %s1997
        %s1999 = sand.u32 %s337, 1
        %s2000 = scalar_lea.sflag [#allocation21], %s1999
        %s2001 = sand.u32 %s337, 1
        %s2002 = smul.addr %s2001, 64
        %s2003 = scalar_lea.vmem [#allocation20], %s2002
        // Predicated region
        $region105: #{tpu_custom_call.1} parent=63 // pred_check
          %p2004 = pneg %p319
        $region106: #{tpu_custom_call.1} parent=63 // pred_check_branch
          %2006 = sbr.rel (%p2004) target = $region108
        $region107: #{tpu_custom_call.1} parent=63 // pred_region
          %s2007 = smul.u32 2, %s43
          %s2008 = ssub.s32 5, %s2007
          %p2009 = scmp.lt.s32.totalorder %s2008, 2
          %s2010 = scalar_select %p2009, %s2008, 2
          %s2011 = smul.u32 128, %s2010
          %s2013 = ssub.s32 256, %s2011
          %2014 = vsyncadd %s1995, %s2013
          %p2015 = scmp.ne.s32.totalorder 0, %s2011
          %s2016 = sadd.s32 %s44, %s2007
          %s2017 = smul.addr %s2016, 128
          %s2018 = scalar_lea.hbm %s11, %s2017
          %s2019 = smul.u32 8, %s2010
          %s2020 = sshll.u32 %s1998, 4
          %s2021 = int_to_ptr.vmem [resolvable:$true] %s2020
          %s2022 = sshll.u32 %s2019, 4
          %2026 = dma.vmem_to_hbm [thread:$0]  (%p2015), %s2021, %s2022, %s2018, %s1995, 128, 128, 8
        $region108: #{tpu_custom_call.1} parent=63 // pred_fallthru
          _
        // Predicated region
        $region109: #{tpu_custom_call.1} parent=63 // pred_check
          %p2027 = pneg %p347
        $region110: #{tpu_custom_call.1} parent=63 // pred_check_branch
          %2029 = sbr.rel (%p2027) target = $region112
        $region111: #{tpu_custom_call.1} parent=63 // pred_region
          %s2030 = smul.u32 2, %s43
          %s2031 = ssub.s32 5, %s2030
          %p2032 = scmp.lt.s32.totalorder %s2031, 2
          %s2033 = scalar_select %p2032, %s2031, 2
          %s2034 = smul.u32 128, %s2033
          %s2035 = smul.u32 %s2034, 4
          %s2037 = ssub.s32 1024, %s2035
          %2038 = vsyncadd %s2000, %s2037
          %p2039 = scmp.ne.s32.totalorder 0, %s2035
          %s2040 = smul.addr %s2030, 4
          %s2041 = sadd.s32 %s44, %s2040
          %s2042 = smul.addr %s2041, 128
          %s2043 = scalar_lea.hbm %s12, %s2042
          %s2044 = smul.u32 %s2033, 4
          %s2045 = smul.u32 8, %s2044
          %s2046 = sshll.u32 %s2003, 4
          %s2047 = int_to_ptr.vmem [resolvable:$true] %s2046
          %s2048 = sshll.u32 %s2045, 4
          %2052 = dma.vmem_to_hbm [thread:$0]  (%p2039), %s2047, %s2048, %s2043, %s2000, 128, 128, 8
        $region112: #{tpu_custom_call.1} parent=63 // pred_fallthru
          _
      $region64: #{tpu_custom_call.1} parent=5 // pred_fallthru
        _
      %p2053 = scmp.le.s32.totalorder 2, %s34
      // Predicated region
      $region113: #{tpu_custom_call.1} parent=5 // pred_check
        %p2054 = pneg %p2053
      $region114: #{tpu_custom_call.1} parent=5 // pred_check_branch
        %2056 = sbr.rel (%p2054) target = $region116
      $region115: #{tpu_custom_call.1} parent=5 // pred_region
        %s2057 = ssub.s32 %s34, 2
        // Predicated region
        $region117: #{tpu_custom_call.1} parent=115 // pred_check
          %p2058 = pneg %p325
        $region118: #{tpu_custom_call.1} parent=115 // pred_check_branch
          %2060 = sbr.rel (%p2058) target = $region120
        $region119: #{tpu_custom_call.1} parent=115 // pred_region
          %s2061 = sand.u32 %s310, 1
          %s2062 = scalar_lea.sflag [#allocation6], %s2061
          %s2063 = sand.u32 %s310, 1
          %s2064 = smul.addr %s2063, 16
          %s2065 = scalar_lea.vmem [#allocation19], %s2064
          %2066 = dma.done %s2062, 256
        $region120: #{tpu_custom_call.1} parent=115 // pred_fallthru
          _
        // Predicated region
        $region121: #{tpu_custom_call.1} parent=115 // pred_check
          %p2067 = pneg %p353
        $region122: #{tpu_custom_call.1} parent=115 // pred_check_branch
          %2069 = sbr.rel (%p2067) target = $region124
        $region123: #{tpu_custom_call.1} parent=115 // pred_region
          %s2070 = sand.u32 %s338, 1
          %s2071 = scalar_lea.sflag [#allocation21], %s2070
          %s2072 = sand.u32 %s338, 1
          %s2073 = smul.addr %s2072, 64
          %s2074 = scalar_lea.vmem [#allocation20], %s2073
          %2075 = dma.done %s2071, 1024
        $region124: #{tpu_custom_call.1} parent=115 // pred_fallthru
          _
      $region116: #{tpu_custom_call.1} parent=5 // pred_fallthru
        _
    $region6: #{tpu_custom_call.1} parent=1 // loop_footer
      %s38 = sadd.s32 1, %s34
    $region7: #{tpu_custom_call.1} parent=1 // loop_footer_branch
      %33 = sbr.rel target = $region3
    $region8: #{tpu_custom_call.1} parent=1 // loop_exit
      _
    %2076 = vsyncpa [#allocation5], 1
    %s2077 = scalar_lea.sflag [#allocation5], 1
    %2078 = vsyncpa %s2077, 1
    %2079 = vsyncpa [#allocation8], 1
    %s2080 = scalar_lea.sflag [#allocation8], 1
    %2081 = vsyncpa %s2080, 1
    %2082 = vsyncpa [#allocation11], 1
    %2083 = vsyncpa [#allocation14], 1
    %2084 = vsyncpa [#allocation17], 1
    %2085 = vsyncpa [#allocation6], 1
    %s2086 = scalar_lea.sflag [#allocation6], 1
    %2087 = vsyncpa %s2086, 1
    %2088 = vsyncpa [#allocation21], 1
    %s2089 = scalar_lea.sflag [#allocation21], 1
    %2090 = vsyncpa %s2089, 1

</llo_original>
